<compile_context>
chip_gen: v6e
topology: v6e:2x2x1
jax: 0.10.0
libtpu: 0.0.40
codegen_flags: <defaults>
</compile_context>

<pallas_src>
import functools

import jax
import jax.numpy as jnp
from jax import lax
from jax.experimental import pallas as pl
from jax.experimental.pallas import tpu as pltpu

C_IN, C_OUT, KH, KW = 3, 6, 3, 3
K_TAPS = KH * KW  # 9


def conv2d_kernel(x_ref, w_ref, b_ref, o_ref, *, img_w):
    # x_ref: (C_IN, l)              channel-major, batch/spatial flattened on lanes
    # w_ref: (C_OUT, KH*KW*C_IN)    taps packed (kh, kw, c)-major
    # b_ref: (C_OUT, 1)
    # o_ref: (C_OUT, l)             lane-dense full conv map (valid window sliced outside)
    l = x_ref.shape[1]
    x = x_ref[...].astype(jnp.float32)
    w = w_ref[...]

    # Tap (kh, kw) of output lane p needs x at lane p + kh*W + kw.  A lane roll
    # by -s provides it; wrap-around (including across images inside a batch
    # block and into per-image pad lanes) only lands on output positions in
    # the last KH-1 rows / KW-1 cols, which the wrapper slices away.
    # NOTE: this invariant holds ONLY for kernel=3, stride=1, padding=0
    # ("valid") convolution followed by the [:, :, :oh, :ow] slice.
    acc = None
    for kh in range(KH):
        for kw in range(KW):
            s = kh * img_w + kw
            tap = x if s == 0 else pltpu.roll(x, shift=(l - s) % l, axis=1)
            t = kh * KW + kw
            contrib = jnp.dot(w[:, t * C_IN:(t + 1) * C_IN], tap,
                              preferred_element_type=jnp.float32)
            acc = contrib if acc is None else acc + contrib

    o_ref[...] = (acc + b_ref[...]).astype(o_ref.dtype)


def _pick_batch_block(n, hw_pad):
    """Fewest, fattest grid steps under a cross-generation VMEM budget."""
    bytes_per_lane = 160          # dbl-buffered, 8-sublane-padded x/out blocks + vreg headroom
    budget = 12 * 1024 * 1024     # fits v5e's 16 MiB default scoped VMEM with margin
    max_lanes = budget // bytes_per_lane
    best = 1
    for blk in range(1, n + 1):
        if n % blk == 0 and blk * hw_pad <= max_lanes:
            best = blk
    return best


def conv2d_pallas(x, w, b):
    n, c_in, h, wdim = x.shape
    assert c_in == C_IN and w.shape == (C_OUT, C_IN, KH, KW) and b.shape == (C_OUT,)
    oh, ow = h - KH + 1, wdim - KW + 1
    hw = h * wdim
    hw_pad = ((hw + 127) // 128) * 128  # lane-align each image instead of whole-batch fallback

    # Layout plumbing done once in XLA (not compute hoisting):
    #   x -> (C_IN, N*hw_pad) channel-major, per-image lane padding at the end.
    x_cf = x.transpose(1, 0, 2, 3).reshape(C_IN, n, hw)
    if hw_pad != hw:
        x_cf = jnp.pad(x_cf, ((0, 0), (0, 0), (0, hw_pad - hw)))
    x_flat = x_cf.reshape(C_IN, n * hw_pad)

    # Weights: (C_OUT, C_IN, KH, KW) -> (C_OUT, 27) with columns in (kh, kw, c) order.
    w_packed = w.transpose(0, 2, 3, 1).reshape(C_OUT, K_TAPS * C_IN).astype(jnp.float32)
    b_col = b.reshape(C_OUT, 1).astype(jnp.float32)

    b_blk = _pick_batch_block(n, hw_pad)
    grid = (n // b_blk,)
    l = b_blk * hw_pad

    # Per-step VMEM estimate: double-buffered x + out blocks, 8-sublane padded.
    step_bytes = 2 * (8 + 8) * l * 4
    cp_kwargs = dict(dimension_semantics=("parallel",))
    if step_bytes > 12 * 1024 * 1024:
        # Only needed when a single image alone blows the budget; keep the
        # request under v7x's 64 MiB physical VMEM.
        cp_kwargs["vmem_limit_bytes"] = min(int(step_bytes * 2), 48 * 1024 * 1024)

    kernel = functools.partial(conv2d_kernel, img_w=wdim)
    cost = pl.CostEstimate(
        flops=2 * n * C_OUT * oh * ow * C_IN * KH * KW,
        transcendentals=0,
        bytes_accessed=4 * (x_flat.size + w_packed.size + b_col.size + C_OUT * n * hw_pad),
    )

    out_flat = pl.pallas_call(
        kernel,
        out_shape=jax.ShapeDtypeStruct((C_OUT, n * hw_pad), x.dtype),
        grid_spec=pltpu.PrefetchScalarGridSpec(
            num_scalar_prefetch=0,
            grid=grid,
            in_specs=[
                pl.BlockSpec((C_IN, l), lambda i: (0, i)),
                pl.BlockSpec((C_OUT, K_TAPS * C_IN), lambda i: (0, 0)),
                pl.BlockSpec((C_OUT, 1), lambda i: (0, 0)),
            ],
            out_specs=pl.BlockSpec((C_OUT, l), lambda i: (0, i)),
        ),
        compiler_params=pltpu.CompilerParams(**cp_kwargs),
        cost_estimate=cost,
    )(x_flat, w_packed, b_col)

    # Slice the valid conv window BEFORE the transpose (less HBM relayout traffic).
    out = (out_flat.reshape(C_OUT, n, hw_pad)[:, :, :hw]
           .reshape(C_OUT, n, h, wdim)[:, :, :oh, :ow]
           .transpose(1, 0, 2, 3))
    return out


if __name__ == "__main__":
    key = jax.random.PRNGKey(0)
    k_x, k_w, k_b = jax.random.split(key, 3)

    # Small example input consistent with Conv2d(3, 6, 3): N=2, C=3, H=W=16.
    x = jax.random.normal(k_x, (2, C_IN, 16, 16), dtype=jnp.float32)

    # Deterministic PyTorch-style init: U(-1/sqrt(fan_in), 1/sqrt(fan_in)).
    fan_in = C_IN * KH * KW
    bound = 1.0 / (fan_in ** 0.5)
    w = jax.random.uniform(k_w, (C_OUT, C_IN, KH, KW), jnp.float32, -bound, bound)
    b = jax.random.uniform(k_b, (C_OUT,), jnp.float32, -bound, bound)

    out = jax.block_until_ready(conv2d_pallas(x, w, b))

    # Reference: XLA conv at HIGHEST precision.  Tolerance leaves headroom for
    # the MXU's default f32 matmul precision inside the Pallas kernel.
    ref = lax.conv_general_dilated(
        x, w, window_strides=(1, 1), padding="VALID",
        dimension_numbers=("NCHW", "OIHW", "NCHW"),
        precision=lax.Precision.HIGHEST) + b.reshape(1, C_OUT, 1, 1)
    assert out.shape == (2, C_OUT, 14, 14)
    assert jnp.allclose(out, ref, atol=5e-3, rtol=5e-3)

    print("KERNEL_OK")
</pallas_src>

<mosaic_0001>
module attributes {stable_mosaic.version = 11 : i64} {
  func.func @conv2d_kernel(%arg0: i32, %arg1: memref<3x512xf32, #tpu.memory_space<vmem>>, %arg2: memref<6x27xf32, #tpu.memory_space<vmem>>, %arg3: memref<6x1xf32, #tpu.memory_space<vmem>>, %arg4: memref<6x512xf32, #tpu.memory_space<vmem>>) attributes {dimension_semantics = [#tpu.dimension_semantics<parallel>], iteration_bounds = array<i64: 1>, scalar_prefetch = 0 : i64, scratch_operands = 0 : i64, tpu.core_type = #tpu.core_type<tc>, window_params = [{transform_indices = @transform_0, window_bounds = array<i64: 3, 512>}, {pipeline_mode = #tpu.pipeline_mode<synchronous>, transform_indices = @transform_1, window_bounds = array<i64: 6, 27>}, {pipeline_mode = #tpu.pipeline_mode<synchronous>, transform_indices = @transform_2, window_bounds = array<i64: 6, 1>}, {transform_indices = @transform_3, window_bounds = array<i64: 6, 512>}]} {
    %c0 = arith.constant 0 : index
    %c0_0 = arith.constant 0 : index
    %0 = vector.load %arg1[%c0, %c0_0] : memref<3x512xf32, #tpu.memory_space<vmem>>, vector<3x512xf32>
    %c0_1 = arith.constant 0 : index
    %c0_2 = arith.constant 0 : index
    %1 = vector.load %arg2[%c0_1, %c0_2] : memref<6x27xf32, #tpu.memory_space<vmem>>, vector<6x27xf32>
    %2 = vector.extract_strided_slice %1 {offsets = [0, 0], sizes = [6, 3], strides = [1, 1]} : vector<6x27xf32> to vector<6x3xf32>
    %cst = arith.constant dense<0.000000e+00> : vector<6x512xf32>
    %3 = tpu.matmul %2, %0, %cst {dimension_numbers = #tpu.dot_dimension_numbers<[1], [0], [0], [1], [0, 0, 1, 1], [], []>} : vector<6x3xf32>, vector<3x512xf32>, vector<6x512xf32> -> vector<6x512xf32>
    %c511_i32 = arith.constant 511 : i32
    %4 = tpu.dynamic_rotate %0 by %c511_i32 dim 1 : vector<3x512xf32>, i32 -> vector<3x512xf32>
    %5 = vector.extract_strided_slice %1 {offsets = [0, 3], sizes = [6, 3], strides = [1, 1]} : vector<6x27xf32> to vector<6x3xf32>
    %cst_3 = arith.constant dense<0.000000e+00> : vector<6x512xf32>
    %6 = tpu.matmul %5, %4, %cst_3 {dimension_numbers = #tpu.dot_dimension_numbers<[1], [0], [0], [1], [0, 0, 1, 1], [], []>} : vector<6x3xf32>, vector<3x512xf32>, vector<6x512xf32> -> vector<6x512xf32>
    %7 = arith.addf %3, %6 : vector<6x512xf32>
    %c510_i32 = arith.constant 510 : i32
    %8 = tpu.dynamic_rotate %0 by %c510_i32 dim 1 : vector<3x512xf32>, i32 -> vector<3x512xf32>
    %9 = vector.extract_strided_slice %1 {offsets = [0, 6], sizes = [6, 3], strides = [1, 1]} : vector<6x27xf32> to vector<6x3xf32>
    %cst_4 = arith.constant dense<0.000000e+00> : vector<6x512xf32>
    %10 = tpu.matmul %9, %8, %cst_4 {dimension_numbers = #tpu.dot_dimension_numbers<[1], [0], [0], [1], [0, 0, 1, 1], [], []>} : vector<6x3xf32>, vector<3x512xf32>, vector<6x512xf32> -> vector<6x512xf32>
    %11 = arith.addf %7, %10 : vector<6x512xf32>
    %c496_i32 = arith.constant 496 : i32
    %12 = tpu.dynamic_rotate %0 by %c496_i32 dim 1 : vector<3x512xf32>, i32 -> vector<3x512xf32>
    %13 = vector.extract_strided_slice %1 {offsets = [0, 9], sizes = [6, 3], strides = [1, 1]} : vector<6x27xf32> to vector<6x3xf32>
    %cst_5 = arith.constant dense<0.000000e+00> : vector<6x512xf32>
    %14 = tpu.matmul %13, %12, %cst_5 {dimension_numbers = #tpu.dot_dimension_numbers<[1], [0], [0], [1], [0, 0, 1, 1], [], []>} : vector<6x3xf32>, vector<3x512xf32>, vector<6x512xf32> -> vector<6x512xf32>
    %15 = arith.addf %11, %14 : vector<6x512xf32>
    %c495_i32 = arith.constant 495 : i32
    %16 = tpu.dynamic_rotate %0 by %c495_i32 dim 1 : vector<3x512xf32>, i32 -> vector<3x512xf32>
    %17 = vector.extract_strided_slice %1 {offsets = [0, 12], sizes = [6, 3], strides = [1, 1]} : vector<6x27xf32> to vector<6x3xf32>
    %cst_6 = arith.constant dense<0.000000e+00> : vector<6x512xf32>
    %18 = tpu.matmul %17, %16, %cst_6 {dimension_numbers = #tpu.dot_dimension_numbers<[1], [0], [0], [1], [0, 0, 1, 1], [], []>} : vector<6x3xf32>, vector<3x512xf32>, vector<6x512xf32> -> vector<6x512xf32>
    %19 = arith.addf %15, %18 : vector<6x512xf32>
    %c494_i32 = arith.constant 494 : i32
    %20 = tpu.dynamic_rotate %0 by %c494_i32 dim 1 : vector<3x512xf32>, i32 -> vector<3x512xf32>
    %21 = vector.extract_strided_slice %1 {offsets = [0, 15], sizes = [6, 3], strides = [1, 1]} : vector<6x27xf32> to vector<6x3xf32>
    %cst_7 = arith.constant dense<0.000000e+00> : vector<6x512xf32>
    %22 = tpu.matmul %21, %20, %cst_7 {dimension_numbers = #tpu.dot_dimension_numbers<[1], [0], [0], [1], [0, 0, 1, 1], [], []>} : vector<6x3xf32>, vector<3x512xf32>, vector<6x512xf32> -> vector<6x512xf32>
    %23 = arith.addf %19, %22 : vector<6x512xf32>
    %c480_i32 = arith.constant 480 : i32
    %24 = tpu.dynamic_rotate %0 by %c480_i32 dim 1 : vector<3x512xf32>, i32 -> vector<3x512xf32>
    %25 = vector.extract_strided_slice %1 {offsets = [0, 18], sizes = [6, 3], strides = [1, 1]} : vector<6x27xf32> to vector<6x3xf32>
    %cst_8 = arith.constant dense<0.000000e+00> : vector<6x512xf32>
    %26 = tpu.matmul %25, %24, %cst_8 {dimension_numbers = #tpu.dot_dimension_numbers<[1], [0], [0], [1], [0, 0, 1, 1], [], []>} : vector<6x3xf32>, vector<3x512xf32>, vector<6x512xf32> -> vector<6x512xf32>
    %27 = arith.addf %23, %26 : vector<6x512xf32>
    %c479_i32 = arith.constant 479 : i32
    %28 = tpu.dynamic_rotate %0 by %c479_i32 dim 1 : vector<3x512xf32>, i32 -> vector<3x512xf32>
    %29 = vector.extract_strided_slice %1 {offsets = [0, 21], sizes = [6, 3], strides = [1, 1]} : vector<6x27xf32> to vector<6x3xf32>
    %cst_9 = arith.constant dense<0.000000e+00> : vector<6x512xf32>
    %30 = tpu.matmul %29, %28, %cst_9 {dimension_numbers = #tpu.dot_dimension_numbers<[1], [0], [0], [1], [0, 0, 1, 1], [], []>} : vector<6x3xf32>, vector<3x512xf32>, vector<6x512xf32> -> vector<6x512xf32>
    %31 = arith.addf %27, %30 : vector<6x512xf32>
    %c478_i32 = arith.constant 478 : i32
    %32 = tpu.dynamic_rotate %0 by %c478_i32 dim 1 : vector<3x512xf32>, i32 -> vector<3x512xf32>
    %33 = vector.extract_strided_slice %1 {offsets = [0, 24], sizes = [6, 3], strides = [1, 1]} : vector<6x27xf32> to vector<6x3xf32>
    %cst_10 = arith.constant dense<0.000000e+00> : vector<6x512xf32>
    %34 = tpu.matmul %33, %32, %cst_10 {dimension_numbers = #tpu.dot_dimension_numbers<[1], [0], [0], [1], [0, 0, 1, 1], [], []>} : vector<6x3xf32>, vector<3x512xf32>, vector<6x512xf32> -> vector<6x512xf32>
    %35 = arith.addf %31, %34 : vector<6x512xf32>
    %c0_11 = arith.constant 0 : index
    %c0_12 = arith.constant 0 : index
    %36 = vector.load %arg3[%c0_11, %c0_12] : memref<6x1xf32, #tpu.memory_space<vmem>>, vector<6x1xf32>
    %37 = vector.broadcast %36 : vector<6x1xf32> to vector<6x512xf32>
    %38 = arith.addf %35, %37 : vector<6x512xf32>
    %c0_13 = arith.constant 0 : index
    %c0_14 = arith.constant 0 : index
    %39 = vector.load %arg4[%c0_13, %c0_14] : memref<6x512xf32, #tpu.memory_space<vmem>>, vector<6x512xf32>
    tpu.vector_store %arg4[%c0_13, %c0_14], %38 {strides = array<i32>} : memref<6x512xf32, #tpu.memory_space<vmem>>, vector<6x512xf32>,
    return
  }
  func.func @transform_0(%arg0: i32) -> (i32, i32) {
    %c0_i32 = arith.constant 0 : i32
    %c0_i32_0 = arith.constant 0 : i32
    return %c0_i32, %arg0 : i32, i32
  }
  func.func @transform_1(%arg0: i32) -> (i32, i32) {
    %c0_i32 = arith.constant 0 : i32
    %c0_i32_0 = arith.constant 0 : i32
    %c0_i32_1 = arith.constant 0 : i32
    return %c0_i32, %c0_i32_0 : i32, i32
  }
  func.func @transform_2(%arg0: i32) -> (i32, i32) {
    %c0_i32 = arith.constant 0 : i32
    %c0_i32_0 = arith.constant 0 : i32
    %c0_i32_1 = arith.constant 0 : i32
    return %c0_i32, %c0_i32_0 : i32, i32
  }
  func.func @transform_3(%arg0: i32) -> (i32, i32) {
    %c0_i32 = arith.constant 0 : i32
    %c0_i32_0 = arith.constant 0 : i32
    return %c0_i32, %arg0 : i32, i32
  }
}

</mosaic_0001>

<llo_original>
// kernel: tpu_custom_call.1
$region0: #{tpu_custom_call.1}
  #allocation0 [shape = 'u32[]', space=smem, size = 0x4, offset = 0x4, fixed_abs, tag = 'smem constant byte address 0x4 - core index']
  #allocation1 [shape = 'u32[144,128]{1,0:T(1,128)}', space=vmem, size = 0x12000, scoped, tag = 'internal scratch']
  %s0 = inlined_call_operand.hbm [shape: f32[3,512], index: 0, kind: input, shape index: {}]
  %s1 = inlined_call_operand.vmem [shape: f32[6,27], index: 1, kind: input, shape index: {}]
  %s2 = inlined_call_operand.vmem [shape: f32[6,1], index: 2, kind: input, shape index: {}]
  %s3 = inlined_call_operand.hbm [shape: f32[6,512], index: 3, kind: output, shape index: {}]
  %s4 = sld [smem:[#allocation0]]
  $region26: #{tpu_custom_call.1} parent=0
    _
  %s6 = ssub.s32 1, %s4
  %s7 = scalar_select 0, %s6, %s4
  $region1: #{tpu_custom_call.1} parent=0
    #allocation2 [shape = 'u8[8192]{0}', space=vmem, size = 0x2000, scoped, tag = 'input window, operand 0, single buffered']
    #allocation3 [shape = 's32[1]{0}', space=sflag, size = 0x4, scoped, tag = 'scoped memory for tpu_custom_call.1']
    #allocation4 [shape = 's32[1]{0}', space=sflag, size = 0x4, scoped, tag = 'scoped memory for tpu_custom_call.1']
    #allocation5 [shape = 'u8[16384]{0}', space=vmem, size = 0x4000, scoped, tag = 'output window, operand 0, single buffered']
    %8 = vsyncpa [#allocation3], 0
    %9 = vsyncpa [#allocation4], 0
    // Predicated region
    $region2: #{tpu_custom_call.1} parent=1 // pred_check
      _
    $region3: #{tpu_custom_call.1} parent=1 // pred_check_branch
      %11 = sbr.rel (0) target = $region5
    $region4: #{tpu_custom_call.1} parent=1 // pred_region
      %s13 = ssub.s32 256, 256
      %14 = vsyncadd [#allocation3], %s13
      %s16 = sshll.u32 [#allocation2], 4
      %s17 = int_to_ptr.vmem [resolvable:$true] %s16
      %19 = dma.hbm_to_vmem [thread:$0]  %s0, 256, %s17, [#allocation3]
    $region5: #{tpu_custom_call.1} parent=1 // pred_fallthru
      _
    // Predicated region
    $region6: #{tpu_custom_call.1} parent=1 // pred_check
      _
    $region7: #{tpu_custom_call.1} parent=1 // pred_check_branch
      %21 = sbr.rel (0) target = $region9
    $region8: #{tpu_custom_call.1} parent=1 // pred_region
      _
    $region9: #{tpu_custom_call.1} parent=1 // pred_fallthru
      _
    // Predicated region
    $region10: #{tpu_custom_call.1} parent=1 // pred_check
      _
    $region11: #{tpu_custom_call.1} parent=1 // pred_check_branch
      %23 = sbr.rel (0) target = $region13
    $region12: #{tpu_custom_call.1} parent=1 // pred_region
      _
    $region13: #{tpu_custom_call.1} parent=1 // pred_fallthru
      _
    // Predicated region
    $region14: #{tpu_custom_call.1} parent=1 // pred_check
      _
    $region15: #{tpu_custom_call.1} parent=1 // pred_check_branch
      %25 = sbr.rel (0) target = $region17
    $region16: #{tpu_custom_call.1} parent=1 // pred_region
      %26 = dma.done [#allocation3], 256
    $region17: #{tpu_custom_call.1} parent=1 // pred_fallthru
      _
    %v27 = vld [vmem:[#allocation2] sm:$0x77]
    %v28 = vld [vmem:[#allocation2 + $0x8] sm:$0x77]
    %v29 = vld [vmem:[%s1] sm:$0x3f]
    %v32 = vcombine.high %v27, %v27
    %v33 = vcombine.high %v28, %v28
    %36 = vrot.lane.b32.xlu0 %v27, 127
    %v37 = vpop.permute.xlu0 %36
    %38 = vrot.lane.b32.xlu0 %v32, 127
    %v39 = vpop.permute.xlu0 %38
    %40 = vrot.lane.b32.xlu0 %v28, 127
    %v41 = vpop.permute.xlu0 %40
    %42 = vrot.lane.b32.xlu0 %v33, 127
    %v43 = vpop.permute.xlu0 %42
    %v44 = vlaneseq
    %v45 = vand.u32 %v44, 127
    %vm46 = vcmp.lt.s32.totalorder %v45, 127
    %v47 = vsel %vm46, %v41, %v43
    %v48 = vsel %vm46, %v39, %v41
    %v49 = vsel %vm46, %v37, %v39
    %v50 = vsel %vm46, %v43, %v37
    %52 = vrot.lane.b32.xlu0 %v29, 125
    %v53 = vpop.permute.xlu0 %52
    %vm54 = vcmask 23552
    %v55 = vsel %vm54, %v53, 0
    %vm57 = vcmask 1042432
    %v59 = vsel %vm57, %v49, 0
    %v62 = vsel %vm57, %v48, 0
    %v65 = vsel %vm57, %v47, 0
    %v68 = vsel %vm57, %v50, 0
    %70 = vmatprep.subr.mxu0 0.0
    %71 = vmatpush1.msra.mxu0 0.0
    %72 = vmatprep.subr.mxu0 0.0
    %73 = vmatpush1.msra.mxu0 0.0
    %74 = vmatprep.subr.mxu0 0.0
    %75 = vmatpush1.msra.mxu0 0.0
    %76 = vmatprep.subr.mxu0 0.0
    %77 = vmatpush1.msra.mxu0 0.0
    %78 = vmatprep.subr.mxu0 0.0
    %79 = vmatpush1.msra.mxu0 0.0
    %80 = vmatprep.subr.mxu0 0.0
    %81 = vmatpush1.msra.mxu0 0.0
    %82 = vmatprep.subr.mxu0 0.0
    %83 = vmatpush1.msra.mxu0 0.0
    %84 = vmatprep.subr.mxu0 0.0
    %85 = vmatpush1.msra.mxu0 0.0
    %86 = vmatprep.subr.mxu0 0.0
    %87 = vmatpush1.msra.mxu0 0.0
    %88 = vmatprep.subr.mxu0 0.0
    %89 = vmatpush1.msra.mxu0 0.0
    %90 = vmatprep.subr.mxu0 0.0
    %91 = vmatpush1.msra.mxu0 0.0
    %92 = vmatprep.subr.mxu0 0.0
    %93 = vmatpush1.msra.mxu0 0.0
    %94 = vmatprep.subr.mxu0 0.0
    %95 = vmatpush1.msra.mxu0 0.0
    %96 = vmatprep.subr.mxu0 0.0
    %97 = vmatpush1.msra.mxu0 0.0
    %98 = vmatprep.subr.mxu0 0.0
    %99 = vmatpush1.msra.mxu0 0.0
    %100 = vmatprep.subr.mxu0 %v62
    %101 = vmatpush1.msra.mxu0 %v59
    %102 = vmatprep.subr.mxu0 0.0
    %103 = vmatpush2.msra.mxu0 0.0
    %104 = vmatprep.subr.mxu0 0.0
    %105 = vmatpush2.msra.mxu0 0.0
    %106 = vmatprep.subr.mxu0 0.0
    %107 = vmatpush2.msra.mxu0 0.0
    %108 = vmatprep.subr.mxu0 0.0
    %109 = vmatpush2.msra.mxu0 0.0
    %110 = vmatprep.subr.mxu0 0.0
    %111 = vmatpush2.msra.mxu0 0.0
    %112 = vmatprep.subr.mxu0 0.0
    %113 = vmatpush2.msra.mxu0 0.0
    %114 = vmatprep.subr.mxu0 0.0
    %115 = vmatpush2.msra.mxu0 0.0
    %116 = vmatprep.subr.mxu0 0.0
    %117 = vmatpush2.msra.mxu0 0.0
    %118 = vmatprep.subr.mxu0 0.0
    %119 = vmatpush2.msra.mxu0 0.0
    %120 = vmatprep.subr.mxu0 0.0
    %121 = vmatpush2.msra.mxu0 0.0
    %122 = vmatprep.subr.mxu0 0.0
    %123 = vmatpush2.msra.mxu0 0.0
    %124 = vmatprep.subr.mxu0 0.0
    %125 = vmatpush2.msra.mxu0 0.0
    %126 = vmatprep.subr.mxu0 0.0
    %127 = vmatpush2.msra.mxu0 0.0
    %128 = vmatprep.subr.mxu0 0.0
    %129 = vmatpush2.msra.mxu0 0.0
    %130 = vmatprep.subr.mxu0 0.0
    %131 = vmatpush2.msra.mxu0 0.0
    %132 = vmatprep.subr.mxu0 0.0
    %133 = vmatpush2.msra.mxu0 0.0
    %134 = vmatprep.mubr.f32.mxu0 0.0
    %135 = vmatmul.mubr.f32.gmra.mxu0 %v55
    %v136 = vpop.f32.mrf.mxu0
    %v137 = vadd.f32 0.0, %v136
    %v138 = vpop.f32.mrf.mxu0
    %v139 = vadd.f32 0.0, %v138
    %140 = vdwg.mxu0
    %141 = vmatprep.subr.mxu0 0.0
    %142 = vmatpush1.msra.mxu0 0.0
    %143 = vmatprep.subr.mxu0 0.0
    %144 = vmatpush1.msra.mxu0 0.0
    %145 = vmatprep.subr.mxu0 0.0
    %146 = vmatpush1.msra.mxu0 0.0
    %147 = vmatprep.subr.mxu0 0.0
    %148 = vmatpush1.msra.mxu0 0.0
    %149 = vmatprep.subr.mxu0 0.0
    %150 = vmatpush1.msra.mxu0 0.0
    %151 = vmatprep.subr.mxu0 0.0
    %152 = vmatpush1.msra.mxu0 0.0
    %153 = vmatprep.subr.mxu0 0.0
    %154 = vmatpush1.msra.mxu0 0.0
    %155 = vmatprep.subr.mxu0 0.0
    %156 = vmatpush1.msra.mxu0 0.0
    %157 = vmatprep.subr.mxu0 0.0
    %158 = vmatpush1.msra.mxu0 0.0
    %159 = vmatprep.subr.mxu0 0.0
    %160 = vmatpush1.msra.mxu0 0.0
    %161 = vmatprep.subr.mxu0 0.0
    %162 = vmatpush1.msra.mxu0 0.0
    %163 = vmatprep.subr.mxu0 0.0
    %164 = vmatpush1.msra.mxu0 0.0
    %165 = vmatprep.subr.mxu0 0.0
    %166 = vmatpush1.msra.mxu0 0.0
    %167 = vmatprep.subr.mxu0 0.0
    %168 = vmatpush1.msra.mxu0 0.0
    %169 = vmatprep.subr.mxu0 0.0
    %170 = vmatpush1.msra.mxu0 0.0
    %171 = vmatprep.subr.mxu0 %v68
    %172 = vmatpush1.msra.mxu0 %v65
    %173 = vmatprep.subr.mxu0 0.0
    %174 = vmatpush2.msra.mxu0 0.0
    %175 = vmatprep.subr.mxu0 0.0
    %176 = vmatpush2.msra.mxu0 0.0
    %177 = vmatprep.subr.mxu0 0.0
    %178 = vmatpush2.msra.mxu0 0.0
    %179 = vmatprep.subr.mxu0 0.0
    %180 = vmatpush2.msra.mxu0 0.0
    %181 = vmatprep.subr.mxu0 0.0
    %182 = vmatpush2.msra.mxu0 0.0
    %183 = vmatprep.subr.mxu0 0.0
    %184 = vmatpush2.msra.mxu0 0.0
    %185 = vmatprep.subr.mxu0 0.0
    %186 = vmatpush2.msra.mxu0 0.0
    %187 = vmatprep.subr.mxu0 0.0
    %188 = vmatpush2.msra.mxu0 0.0
    %189 = vmatprep.subr.mxu0 0.0
    %190 = vmatpush2.msra.mxu0 0.0
    %191 = vmatprep.subr.mxu0 0.0
    %192 = vmatpush2.msra.mxu0 0.0
    %193 = vmatprep.subr.mxu0 0.0
    %194 = vmatpush2.msra.mxu0 0.0
    %195 = vmatprep.subr.mxu0 0.0
    %196 = vmatpush2.msra.mxu0 0.0
    %197 = vmatprep.subr.mxu0 0.0
    %198 = vmatpush2.msra.mxu0 0.0
    %199 = vmatprep.subr.mxu0 0.0
    %200 = vmatpush2.msra.mxu0 0.0
    %201 = vmatprep.subr.mxu0 0.0
    %202 = vmatpush2.msra.mxu0 0.0
    %203 = vmatprep.subr.mxu0 0.0
    %204 = vmatpush2.msra.mxu0 0.0
    %205 = vmatprep.mubr.f32.mxu0 0.0
    %206 = vmatmul.mubr.f32.gmra.mxu0 %v55
    %v207 = vpop.f32.mrf.mxu0
    %v208 = vadd.f32 0.0, %v207
    %v209 = vpop.f32.mrf.mxu0
    %v210 = vadd.f32 0.0, %v209
    %211 = vdwg.mxu0
    %v212 = vsel %vm54, %v29, 0
    %v214 = vsel %vm57, %v27, 0
    %v216 = vsel %vm57, %v32, 0
    %v218 = vsel %vm57, %v28, 0
    %v220 = vsel %vm57, %v33, 0
    %222 = vmatprep.subr.mxu0 0.0
    %223 = vmatpush1.msra.mxu0 0.0
    %224 = vmatprep.subr.mxu0 0.0
    %225 = vmatpush1.msra.mxu0 0.0
    %226 = vmatprep.subr.mxu0 0.0
    %227 = vmatpush1.msra.mxu0 0.0
    %228 = vmatprep.subr.mxu0 0.0
    %229 = vmatpush1.msra.mxu0 0.0
    %230 = vmatprep.subr.mxu0 0.0
    %231 = vmatpush1.msra.mxu0 0.0
    %232 = vmatprep.subr.mxu0 0.0
    %233 = vmatpush1.msra.mxu0 0.0
    %234 = vmatprep.subr.mxu0 0.0
    %235 = vmatpush1.msra.mxu0 0.0
    %236 = vmatprep.subr.mxu0 0.0
    %237 = vmatpush1.msra.mxu0 0.0
    %238 = vmatprep.subr.mxu0 0.0
    %239 = vmatpush1.msra.mxu0 0.0
    %240 = vmatprep.subr.mxu0 0.0
    %241 = vmatpush1.msra.mxu0 0.0
    %242 = vmatprep.subr.mxu0 0.0
    %243 = vmatpush1.msra.mxu0 0.0
    %244 = vmatprep.subr.mxu0 0.0
    %245 = vmatpush1.msra.mxu0 0.0
    %246 = vmatprep.subr.mxu0 0.0
    %247 = vmatpush1.msra.mxu0 0.0
    %248 = vmatprep.subr.mxu0 0.0
    %249 = vmatpush1.msra.mxu0 0.0
    %250 = vmatprep.subr.mxu0 0.0
    %251 = vmatpush1.msra.mxu0 0.0
    %252 = vmatprep.subr.mxu0 %v216
    %253 = vmatpush1.msra.mxu0 %v214
    %254 = vmatprep.subr.mxu0 0.0
    %255 = vmatpush2.msra.mxu0 0.0
    %256 = vmatprep.subr.mxu0 0.0
    %257 = vmatpush2.msra.mxu0 0.0
    %258 = vmatprep.subr.mxu0 0.0
    %259 = vmatpush2.msra.mxu0 0.0
    %260 = vmatprep.subr.mxu0 0.0
    %261 = vmatpush2.msra.mxu0 0.0
    %262 = vmatprep.subr.mxu0 0.0
    %263 = vmatpush2.msra.mxu0 0.0
    %264 = vmatprep.subr.mxu0 0.0
    %265 = vmatpush2.msra.mxu0 0.0
    %266 = vmatprep.subr.mxu0 0.0
    %267 = vmatpush2.msra.mxu0 0.0
    %268 = vmatprep.subr.mxu0 0.0
    %269 = vmatpush2.msra.mxu0 0.0
    %270 = vmatprep.subr.mxu0 0.0
    %271 = vmatpush2.msra.mxu0 0.0
    %272 = vmatprep.subr.mxu0 0.0
    %273 = vmatpush2.msra.mxu0 0.0
    %274 = vmatprep.subr.mxu0 0.0
    %275 = vmatpush2.msra.mxu0 0.0
    %276 = vmatprep.subr.mxu0 0.0
    %277 = vmatpush2.msra.mxu0 0.0
    %278 = vmatprep.subr.mxu0 0.0
    %279 = vmatpush2.msra.mxu0 0.0
    %280 = vmatprep.subr.mxu0 0.0
    %281 = vmatpush2.msra.mxu0 0.0
    %282 = vmatprep.subr.mxu0 0.0
    %283 = vmatpush2.msra.mxu0 0.0
    %284 = vmatprep.subr.mxu0 0.0
    %285 = vmatpush2.msra.mxu0 0.0
    %286 = vmatprep.mubr.f32.mxu0 0.0
    %287 = vmatmul.mubr.f32.gmra.mxu0 %v212
    %v288 = vpop.f32.mrf.mxu0
    %v289 = vadd.f32 %v137, %v288
    %v290 = vpop.f32.mrf.mxu0
    %v291 = vadd.f32 %v139, %v290
    %292 = vdwg.mxu0
    %293 = vmatprep.subr.mxu0 0.0
    %294 = vmatpush1.msra.mxu0 0.0
    %295 = vmatprep.subr.mxu0 0.0
    %296 = vmatpush1.msra.mxu0 0.0
    %297 = vmatprep.subr.mxu0 0.0
    %298 = vmatpush1.msra.mxu0 0.0
    %299 = vmatprep.subr.mxu0 0.0
    %300 = vmatpush1.msra.mxu0 0.0
    %301 = vmatprep.subr.mxu0 0.0
    %302 = vmatpush1.msra.mxu0 0.0
    %303 = vmatprep.subr.mxu0 0.0
    %304 = vmatpush1.msra.mxu0 0.0
    %305 = vmatprep.subr.mxu0 0.0
    %306 = vmatpush1.msra.mxu0 0.0
    %307 = vmatprep.subr.mxu0 0.0
    %308 = vmatpush1.msra.mxu0 0.0
    %309 = vmatprep.subr.mxu0 0.0
    %310 = vmatpush1.msra.mxu0 0.0
    %311 = vmatprep.subr.mxu0 0.0
    %312 = vmatpush1.msra.mxu0 0.0
    %313 = vmatprep.subr.mxu0 0.0
    %314 = vmatpush1.msra.mxu0 0.0
    %315 = vmatprep.subr.mxu0 0.0
    %316 = vmatpush1.msra.mxu0 0.0
    %317 = vmatprep.subr.mxu0 0.0
    %318 = vmatpush1.msra.mxu0 0.0
    %319 = vmatprep.subr.mxu0 0.0
    %320 = vmatpush1.msra.mxu0 0.0
    %321 = vmatprep.subr.mxu0 0.0
    %322 = vmatpush1.msra.mxu0 0.0
    %323 = vmatprep.subr.mxu0 %v220
    %324 = vmatpush1.msra.mxu0 %v218
    %325 = vmatprep.subr.mxu0 0.0
    %326 = vmatpush2.msra.mxu0 0.0
    %327 = vmatprep.subr.mxu0 0.0
    %328 = vmatpush2.msra.mxu0 0.0
    %329 = vmatprep.subr.mxu0 0.0
    %330 = vmatpush2.msra.mxu0 0.0
    %331 = vmatprep.subr.mxu0 0.0
    %332 = vmatpush2.msra.mxu0 0.0
    %333 = vmatprep.subr.mxu0 0.0
    %334 = vmatpush2.msra.mxu0 0.0
    %335 = vmatprep.subr.mxu0 0.0
    %336 = vmatpush2.msra.mxu0 0.0
    %337 = vmatprep.subr.mxu0 0.0
    %338 = vmatpush2.msra.mxu0 0.0
    %339 = vmatprep.subr.mxu0 0.0
    %340 = vmatpush2.msra.mxu0 0.0
    %341 = vmatprep.subr.mxu0 0.0
    %342 = vmatpush2.msra.mxu0 0.0
    %343 = vmatprep.subr.mxu0 0.0
    %344 = vmatpush2.msra.mxu0 0.0
    %345 = vmatprep.subr.mxu0 0.0
    %346 = vmatpush2.msra.mxu0 0.0
    %347 = vmatprep.subr.mxu0 0.0
    %348 = vmatpush2.msra.mxu0 0.0
    %349 = vmatprep.subr.mxu0 0.0
    %350 = vmatpush2.msra.mxu0 0.0
    %351 = vmatprep.subr.mxu0 0.0
    %352 = vmatpush2.msra.mxu0 0.0
    %353 = vmatprep.subr.mxu0 0.0
    %354 = vmatpush2.msra.mxu0 0.0
    %355 = vmatprep.subr.mxu0 0.0
    %356 = vmatpush2.msra.mxu0 0.0
    %357 = vmatprep.mubr.f32.mxu0 0.0
    %358 = vmatmul.mubr.f32.gmra.mxu0 %v212
    %v359 = vpop.f32.mrf.mxu0
    %v360 = vadd.f32 %v208, %v359
    %v361 = vpop.f32.mrf.mxu0
    %v362 = vadd.f32 %v210, %v361
    %363 = vdwg.mxu0
    %364 = vrot.lane.b32.xlu0 %v27, 126
    %v365 = vpop.permute.xlu0 %364
    %366 = vrot.lane.b32.xlu0 %v32, 126
    %v367 = vpop.permute.xlu0 %366
    %368 = vrot.lane.b32.xlu0 %v28, 126
    %v369 = vpop.permute.xlu0 %368
    %370 = vrot.lane.b32.xlu0 %v33, 126
    %v371 = vpop.permute.xlu0 %370
    %vm372 = vcmp.lt.s32.totalorder %v45, 126
    %v373 = vsel %vm372, %v369, %v371
    %v374 = vsel %vm372, %v367, %v369
    %v375 = vsel %vm372, %v365, %v367
    %v376 = vsel %vm372, %v371, %v365
    %377 = vrot.lane.b32.xlu0 %v29, 122
    %v378 = vpop.permute.xlu0 %377
    %v379 = vsel %vm54, %v378, 0
    %v382 = vsel %vm57, %v375, 0
    %v385 = vsel %vm57, %v374, 0
    %v388 = vsel %vm57, %v373, 0
    %v391 = vsel %vm57, %v376, 0
    %393 = vmatprep.subr.mxu0 0.0
    %394 = vmatpush1.msra.mxu0 0.0
    %395 = vmatprep.subr.mxu0 0.0
    %396 = vmatpush1.msra.mxu0 0.0
    %397 = vmatprep.subr.mxu0 0.0
    %398 = vmatpush1.msra.mxu0 0.0
    %399 = vmatprep.subr.mxu0 0.0
    %400 = vmatpush1.msra.mxu0 0.0
    %401 = vmatprep.subr.mxu0 0.0
    %402 = vmatpush1.msra.mxu0 0.0
    %403 = vmatprep.subr.mxu0 0.0
    %404 = vmatpush1.msra.mxu0 0.0
    %405 = vmatprep.subr.mxu0 0.0
    %406 = vmatpush1.msra.mxu0 0.0
    %407 = vmatprep.subr.mxu0 0.0
    %408 = vmatpush1.msra.mxu0 0.0
    %409 = vmatprep.subr.mxu0 0.0
    %410 = vmatpush1.msra.mxu0 0.0
    %411 = vmatprep.subr.mxu0 0.0
    %412 = vmatpush1.msra.mxu0 0.0
    %413 = vmatprep.subr.mxu0 0.0
    %414 = vmatpush1.msra.mxu0 0.0
    %415 = vmatprep.subr.mxu0 0.0
    %416 = vmatpush1.msra.mxu0 0.0
    %417 = vmatprep.subr.mxu0 0.0
    %418 = vmatpush1.msra.mxu0 0.0
    %419 = vmatprep.subr.mxu0 0.0
    %420 = vmatpush1.msra.mxu0 0.0
    %421 = vmatprep.subr.mxu0 0.0
    %422 = vmatpush1.msra.mxu0 0.0
    %423 = vmatprep.subr.mxu0 %v385
    %424 = vmatpush1.msra.mxu0 %v382
    %425 = vmatprep.subr.mxu0 0.0
    %426 = vmatpush2.msra.mxu0 0.0
    %427 = vmatprep.subr.mxu0 0.0
    %428 = vmatpush2.msra.mxu0 0.0
    %429 = vmatprep.subr.mxu0 0.0
    %430 = vmatpush2.msra.mxu0 0.0
    %431 = vmatprep.subr.mxu0 0.0
    %432 = vmatpush2.msra.mxu0 0.0
    %433 = vmatprep.subr.mxu0 0.0
    %434 = vmatpush2.msra.mxu0 0.0
    %435 = vmatprep.subr.mxu0 0.0
    %436 = vmatpush2.msra.mxu0 0.0
    %437 = vmatprep.subr.mxu0 0.0
    %438 = vmatpush2.msra.mxu0 0.0
    %439 = vmatprep.subr.mxu0 0.0
    %440 = vmatpush2.msra.mxu0 0.0
    %441 = vmatprep.subr.mxu0 0.0
    %442 = vmatpush2.msra.mxu0 0.0
    %443 = vmatprep.subr.mxu0 0.0
    %444 = vmatpush2.msra.mxu0 0.0
    %445 = vmatprep.subr.mxu0 0.0
    %446 = vmatpush2.msra.mxu0 0.0
    %447 = vmatprep.subr.mxu0 0.0
    %448 = vmatpush2.msra.mxu0 0.0
    %449 = vmatprep.subr.mxu0 0.0
    %450 = vmatpush2.msra.mxu0 0.0
    %451 = vmatprep.subr.mxu0 0.0
    %452 = vmatpush2.msra.mxu0 0.0
    %453 = vmatprep.subr.mxu0 0.0
    %454 = vmatpush2.msra.mxu0 0.0
    %455 = vmatprep.subr.mxu0 0.0
    %456 = vmatpush2.msra.mxu0 0.0
    %457 = vmatprep.mubr.f32.mxu0 0.0
    %458 = vmatmul.mubr.f32.gmra.mxu0 %v379
    %v459 = vpop.f32.mrf.mxu0
    %v460 = vadd.f32 0.0, %v459
    %v461 = vpop.f32.mrf.mxu0
    %v462 = vadd.f32 0.0, %v461
    %463 = vdwg.mxu0
    %464 = vmatprep.subr.mxu0 0.0
    %465 = vmatpush1.msra.mxu0 0.0
    %466 = vmatprep.subr.mxu0 0.0
    %467 = vmatpush1.msra.mxu0 0.0
    %468 = vmatprep.subr.mxu0 0.0
    %469 = vmatpush1.msra.mxu0 0.0
    %470 = vmatprep.subr.mxu0 0.0
    %471 = vmatpush1.msra.mxu0 0.0
    %472 = vmatprep.subr.mxu0 0.0
    %473 = vmatpush1.msra.mxu0 0.0
    %474 = vmatprep.subr.mxu0 0.0
    %475 = vmatpush1.msra.mxu0 0.0
    %476 = vmatprep.subr.mxu0 0.0
    %477 = vmatpush1.msra.mxu0 0.0
    %478 = vmatprep.subr.mxu0 0.0
    %479 = vmatpush1.msra.mxu0 0.0
    %480 = vmatprep.subr.mxu0 0.0
    %481 = vmatpush1.msra.mxu0 0.0
    %482 = vmatprep.subr.mxu0 0.0
    %483 = vmatpush1.msra.mxu0 0.0
    %484 = vmatprep.subr.mxu0 0.0
    %485 = vmatpush1.msra.mxu0 0.0
    %486 = vmatprep.subr.mxu0 0.0
    %487 = vmatpush1.msra.mxu0 0.0
    %488 = vmatprep.subr.mxu0 0.0
    %489 = vmatpush1.msra.mxu0 0.0
    %490 = vmatprep.subr.mxu0 0.0
    %491 = vmatpush1.msra.mxu0 0.0
    %492 = vmatprep.subr.mxu0 0.0
    %493 = vmatpush1.msra.mxu0 0.0
    %494 = vmatprep.subr.mxu0 %v391
    %495 = vmatpush1.msra.mxu0 %v388
    %496 = vmatprep.subr.mxu0 0.0
    %497 = vmatpush2.msra.mxu0 0.0
    %498 = vmatprep.subr.mxu0 0.0
    %499 = vmatpush2.msra.mxu0 0.0
    %500 = vmatprep.subr.mxu0 0.0
    %501 = vmatpush2.msra.mxu0 0.0
    %502 = vmatprep.subr.mxu0 0.0
    %503 = vmatpush2.msra.mxu0 0.0
    %504 = vmatprep.subr.mxu0 0.0
    %505 = vmatpush2.msra.mxu0 0.0
    %506 = vmatprep.subr.mxu0 0.0
    %507 = vmatpush2.msra.mxu0 0.0
    %508 = vmatprep.subr.mxu0 0.0
    %509 = vmatpush2.msra.mxu0 0.0
    %510 = vmatprep.subr.mxu0 0.0
    %511 = vmatpush2.msra.mxu0 0.0
    %512 = vmatprep.subr.mxu0 0.0
    %513 = vmatpush2.msra.mxu0 0.0
    %514 = vmatprep.subr.mxu0 0.0
    %515 = vmatpush2.msra.mxu0 0.0
    %516 = vmatprep.subr.mxu0 0.0
    %517 = vmatpush2.msra.mxu0 0.0
    %518 = vmatprep.subr.mxu0 0.0
    %519 = vmatpush2.msra.mxu0 0.0
    %520 = vmatprep.subr.mxu0 0.0
    %521 = vmatpush2.msra.mxu0 0.0
    %522 = vmatprep.subr.mxu0 0.0
    %523 = vmatpush2.msra.mxu0 0.0
    %524 = vmatprep.subr.mxu0 0.0
    %525 = vmatpush2.msra.mxu0 0.0
    %526 = vmatprep.subr.mxu0 0.0
    %527 = vmatpush2.msra.mxu0 0.0
    %528 = vmatprep.mubr.f32.mxu0 0.0
    %529 = vmatmul.mubr.f32.gmra.mxu0 %v379
    %v530 = vpop.f32.mrf.mxu0
    %v531 = vadd.f32 0.0, %v530
    %v532 = vpop.f32.mrf.mxu0
    %v533 = vadd.f32 0.0, %v532
    %534 = vdwg.mxu0
    %v535 = vadd.f32 %v289, %v460
    %v536 = vadd.f32 %v291, %v462
    %v537 = vadd.f32 %v360, %v531
    %v538 = vadd.f32 %v362, %v533
    %539 = vrot.lane.b32.xlu0 %v27, 112
    %v540 = vpop.permute.xlu0 %539
    %541 = vrot.lane.b32.xlu0 %v32, 112
    %v542 = vpop.permute.xlu0 %541
    %543 = vrot.lane.b32.xlu0 %v28, 112
    %v544 = vpop.permute.xlu0 %543
    %545 = vrot.lane.b32.xlu0 %v33, 112
    %v546 = vpop.permute.xlu0 %545
    %vm547 = vcmp.lt.s32.totalorder %v45, 112
    %v548 = vsel %vm547, %v544, %v546
    %v549 = vsel %vm547, %v542, %v544
    %v550 = vsel %vm547, %v540, %v542
    %v551 = vsel %vm547, %v546, %v540
    %552 = vrot.lane.b32.xlu0 %v29, 119
    %v553 = vpop.permute.xlu0 %552
    %v554 = vsel %vm54, %v553, 0
    %v557 = vsel %vm57, %v550, 0
    %v560 = vsel %vm57, %v549, 0
    %v563 = vsel %vm57, %v548, 0
    %v566 = vsel %vm57, %v551, 0
    %568 = vmatprep.subr.mxu0 0.0
    %569 = vmatpush1.msra.mxu0 0.0
    %570 = vmatprep.subr.mxu0 0.0
    %571 = vmatpush1.msra.mxu0 0.0
    %572 = vmatprep.subr.mxu0 0.0
    %573 = vmatpush1.msra.mxu0 0.0
    %574 = vmatprep.subr.mxu0 0.0
    %575 = vmatpush1.msra.mxu0 0.0
    %576 = vmatprep.subr.mxu0 0.0
    %577 = vmatpush1.msra.mxu0 0.0
    %578 = vmatprep.subr.mxu0 0.0
    %579 = vmatpush1.msra.mxu0 0.0
    %580 = vmatprep.subr.mxu0 0.0
    %581 = vmatpush1.msra.mxu0 0.0
    %582 = vmatprep.subr.mxu0 0.0
    %583 = vmatpush1.msra.mxu0 0.0
    %584 = vmatprep.subr.mxu0 0.0
    %585 = vmatpush1.msra.mxu0 0.0
    %586 = vmatprep.subr.mxu0 0.0
    %587 = vmatpush1.msra.mxu0 0.0
    %588 = vmatprep.subr.mxu0 0.0
    %589 = vmatpush1.msra.mxu0 0.0
    %590 = vmatprep.subr.mxu0 0.0
    %591 = vmatpush1.msra.mxu0 0.0
    %592 = vmatprep.subr.mxu0 0.0
    %593 = vmatpush1.msra.mxu0 0.0
    %594 = vmatprep.subr.mxu0 0.0
    %595 = vmatpush1.msra.mxu0 0.0
    %596 = vmatprep.subr.mxu0 0.0
    %597 = vmatpush1.msra.mxu0 0.0
    %598 = vmatprep.subr.mxu0 %v560
    %599 = vmatpush1.msra.mxu0 %v557
    %600 = vmatprep.subr.mxu0 0.0
    %601 = vmatpush2.msra.mxu0 0.0
    %602 = vmatprep.subr.mxu0 0.0
    %603 = vmatpush2.msra.mxu0 0.0
    %604 = vmatprep.subr.mxu0 0.0
    %605 = vmatpush2.msra.mxu0 0.0
    %606 = vmatprep.subr.mxu0 0.0
    %607 = vmatpush2.msra.mxu0 0.0
    %608 = vmatprep.subr.mxu0 0.0
    %609 = vmatpush2.msra.mxu0 0.0
    %610 = vmatprep.subr.mxu0 0.0
    %611 = vmatpush2.msra.mxu0 0.0
    %612 = vmatprep.subr.mxu0 0.0
    %613 = vmatpush2.msra.mxu0 0.0
    %614 = vmatprep.subr.mxu0 0.0
    %615 = vmatpush2.msra.mxu0 0.0
    %616 = vmatprep.subr.mxu0 0.0
    %617 = vmatpush2.msra.mxu0 0.0
    %618 = vmatprep.subr.mxu0 0.0
    %619 = vmatpush2.msra.mxu0 0.0
    %620 = vmatprep.subr.mxu0 0.0
    %621 = vmatpush2.msra.mxu0 0.0
    %622 = vmatprep.subr.mxu0 0.0
    %623 = vmatpush2.msra.mxu0 0.0
    %624 = vmatprep.subr.mxu0 0.0
    %625 = vmatpush2.msra.mxu0 0.0
    %626 = vmatprep.subr.mxu0 0.0
    %627 = vmatpush2.msra.mxu0 0.0
    %628 = vmatprep.subr.mxu0 0.0
    %629 = vmatpush2.msra.mxu0 0.0
    %630 = vmatprep.subr.mxu0 0.0
    %631 = vmatpush2.msra.mxu0 0.0
    %632 = vmatprep.mubr.f32.mxu0 0.0
    %633 = vmatmul.mubr.f32.gmra.mxu0 %v554
    %v634 = vpop.f32.mrf.mxu0
    %v635 = vadd.f32 0.0, %v634
    %v636 = vpop.f32.mrf.mxu0
    %v637 = vadd.f32 0.0, %v636
    %638 = vdwg.mxu0
    %639 = vmatprep.subr.mxu0 0.0
    %640 = vmatpush1.msra.mxu0 0.0
    %641 = vmatprep.subr.mxu0 0.0
    %642 = vmatpush1.msra.mxu0 0.0
    %643 = vmatprep.subr.mxu0 0.0
    %644 = vmatpush1.msra.mxu0 0.0
    %645 = vmatprep.subr.mxu0 0.0
    %646 = vmatpush1.msra.mxu0 0.0
    %647 = vmatprep.subr.mxu0 0.0
    %648 = vmatpush1.msra.mxu0 0.0
    %649 = vmatprep.subr.mxu0 0.0
    %650 = vmatpush1.msra.mxu0 0.0
    %651 = vmatprep.subr.mxu0 0.0
    %652 = vmatpush1.msra.mxu0 0.0
    %653 = vmatprep.subr.mxu0 0.0
    %654 = vmatpush1.msra.mxu0 0.0
    %655 = vmatprep.subr.mxu0 0.0
    %656 = vmatpush1.msra.mxu0 0.0
    %657 = vmatprep.subr.mxu0 0.0
    %658 = vmatpush1.msra.mxu0 0.0
    %659 = vmatprep.subr.mxu0 0.0
    %660 = vmatpush1.msra.mxu0 0.0
    %661 = vmatprep.subr.mxu0 0.0
    %662 = vmatpush1.msra.mxu0 0.0
    %663 = vmatprep.subr.mxu0 0.0
    %664 = vmatpush1.msra.mxu0 0.0
    %665 = vmatprep.subr.mxu0 0.0
    %666 = vmatpush1.msra.mxu0 0.0
    %667 = vmatprep.subr.mxu0 0.0
    %668 = vmatpush1.msra.mxu0 0.0
    %669 = vmatprep.subr.mxu0 %v566
    %670 = vmatpush1.msra.mxu0 %v563
    %671 = vmatprep.subr.mxu0 0.0
    %672 = vmatpush2.msra.mxu0 0.0
    %673 = vmatprep.subr.mxu0 0.0
    %674 = vmatpush2.msra.mxu0 0.0
    %675 = vmatprep.subr.mxu0 0.0
    %676 = vmatpush2.msra.mxu0 0.0
    %677 = vmatprep.subr.mxu0 0.0
    %678 = vmatpush2.msra.mxu0 0.0
    %679 = vmatprep.subr.mxu0 0.0
    %680 = vmatpush2.msra.mxu0 0.0
    %681 = vmatprep.subr.mxu0 0.0
    %682 = vmatpush2.msra.mxu0 0.0
    %683 = vmatprep.subr.mxu0 0.0
    %684 = vmatpush2.msra.mxu0 0.0
    %685 = vmatprep.subr.mxu0 0.0
    %686 = vmatpush2.msra.mxu0 0.0
    %687 = vmatprep.subr.mxu0 0.0
    %688 = vmatpush2.msra.mxu0 0.0
    %689 = vmatprep.subr.mxu0 0.0
    %690 = vmatpush2.msra.mxu0 0.0
    %691 = vmatprep.subr.mxu0 0.0
    %692 = vmatpush2.msra.mxu0 0.0
    %693 = vmatprep.subr.mxu0 0.0
    %694 = vmatpush2.msra.mxu0 0.0
    %695 = vmatprep.subr.mxu0 0.0
    %696 = vmatpush2.msra.mxu0 0.0
    %697 = vmatprep.subr.mxu0 0.0
    %698 = vmatpush2.msra.mxu0 0.0
    %699 = vmatprep.subr.mxu0 0.0
    %700 = vmatpush2.msra.mxu0 0.0
    %701 = vmatprep.subr.mxu0 0.0
    %702 = vmatpush2.msra.mxu0 0.0
    %703 = vmatprep.mubr.f32.mxu0 0.0
    %704 = vmatmul.mubr.f32.gmra.mxu0 %v554
    %v705 = vpop.f32.mrf.mxu0
    %v706 = vadd.f32 0.0, %v705
    %v707 = vpop.f32.mrf.mxu0
    %v708 = vadd.f32 0.0, %v707
    %709 = vdwg.mxu0
    %v710 = vadd.f32 %v535, %v635
    %v711 = vadd.f32 %v536, %v637
    %v712 = vadd.f32 %v537, %v706
    %v713 = vadd.f32 %v538, %v708
    %714 = vrot.lane.b32.xlu0 %v27, 111
    %v715 = vpop.permute.xlu0 %714
    %716 = vrot.lane.b32.xlu0 %v32, 111
    %v717 = vpop.permute.xlu0 %716
    %718 = vrot.lane.b32.xlu0 %v28, 111
    %v719 = vpop.permute.xlu0 %718
    %720 = vrot.lane.b32.xlu0 %v33, 111
    %v721 = vpop.permute.xlu0 %720
    %vm722 = vcmp.lt.s32.totalorder %v45, 111
    %v723 = vsel %vm722, %v719, %v721
    %v724 = vsel %vm722, %v717, %v719
    %v725 = vsel %vm722, %v715, %v717
    %v726 = vsel %vm722, %v721, %v715
    %727 = vrot.lane.b32.xlu0 %v29, 116
    %v728 = vpop.permute.xlu0 %727
    %v729 = vsel %vm54, %v728, 0
    %v732 = vsel %vm57, %v725, 0
    %v735 = vsel %vm57, %v724, 0
    %v738 = vsel %vm57, %v723, 0
    %v741 = vsel %vm57, %v726, 0
    %743 = vmatprep.subr.mxu0 0.0
    %744 = vmatpush1.msra.mxu0 0.0
    %745 = vmatprep.subr.mxu0 0.0
    %746 = vmatpush1.msra.mxu0 0.0
    %747 = vmatprep.subr.mxu0 0.0
    %748 = vmatpush1.msra.mxu0 0.0
    %749 = vmatprep.subr.mxu0 0.0
    %750 = vmatpush1.msra.mxu0 0.0
    %751 = vmatprep.subr.mxu0 0.0
    %752 = vmatpush1.msra.mxu0 0.0
    %753 = vmatprep.subr.mxu0 0.0
    %754 = vmatpush1.msra.mxu0 0.0
    %755 = vmatprep.subr.mxu0 0.0
    %756 = vmatpush1.msra.mxu0 0.0
    %757 = vmatprep.subr.mxu0 0.0
    %758 = vmatpush1.msra.mxu0 0.0
    %759 = vmatprep.subr.mxu0 0.0
    %760 = vmatpush1.msra.mxu0 0.0
    %761 = vmatprep.subr.mxu0 0.0
    %762 = vmatpush1.msra.mxu0 0.0
    %763 = vmatprep.subr.mxu0 0.0
    %764 = vmatpush1.msra.mxu0 0.0
    %765 = vmatprep.subr.mxu0 0.0
    %766 = vmatpush1.msra.mxu0 0.0
    %767 = vmatprep.subr.mxu0 0.0
    %768 = vmatpush1.msra.mxu0 0.0
    %769 = vmatprep.subr.mxu0 0.0
    %770 = vmatpush1.msra.mxu0 0.0
    %771 = vmatprep.subr.mxu0 0.0
    %772 = vmatpush1.msra.mxu0 0.0
    %773 = vmatprep.subr.mxu0 %v735
    %774 = vmatpush1.msra.mxu0 %v732
    %775 = vmatprep.subr.mxu0 0.0
    %776 = vmatpush2.msra.mxu0 0.0
    %777 = vmatprep.subr.mxu0 0.0
    %778 = vmatpush2.msra.mxu0 0.0
    %779 = vmatprep.subr.mxu0 0.0
    %780 = vmatpush2.msra.mxu0 0.0
    %781 = vmatprep.subr.mxu0 0.0
    %782 = vmatpush2.msra.mxu0 0.0
    %783 = vmatprep.subr.mxu0 0.0
    %784 = vmatpush2.msra.mxu0 0.0
    %785 = vmatprep.subr.mxu0 0.0
    %786 = vmatpush2.msra.mxu0 0.0
    %787 = vmatprep.subr.mxu0 0.0
    %788 = vmatpush2.msra.mxu0 0.0
    %789 = vmatprep.subr.mxu0 0.0
    %790 = vmatpush2.msra.mxu0 0.0
    %791 = vmatprep.subr.mxu0 0.0
    %792 = vmatpush2.msra.mxu0 0.0
    %793 = vmatprep.subr.mxu0 0.0
    %794 = vmatpush2.msra.mxu0 0.0
    %795 = vmatprep.subr.mxu0 0.0
    %796 = vmatpush2.msra.mxu0 0.0
    %797 = vmatprep.subr.mxu0 0.0
    %798 = vmatpush2.msra.mxu0 0.0
    %799 = vmatprep.subr.mxu0 0.0
    %800 = vmatpush2.msra.mxu0 0.0
    %801 = vmatprep.subr.mxu0 0.0
    %802 = vmatpush2.msra.mxu0 0.0
    %803 = vmatprep.subr.mxu0 0.0
    %804 = vmatpush2.msra.mxu0 0.0
    %805 = vmatprep.subr.mxu0 0.0
    %806 = vmatpush2.msra.mxu0 0.0
    %807 = vmatprep.mubr.f32.mxu0 0.0
    %808 = vmatmul.mubr.f32.gmra.mxu0 %v729
    %v809 = vpop.f32.mrf.mxu0
    %v810 = vadd.f32 0.0, %v809
    %v811 = vpop.f32.mrf.mxu0
    %v812 = vadd.f32 0.0, %v811
    %813 = vdwg.mxu0
    %814 = vmatprep.subr.mxu0 0.0
    %815 = vmatpush1.msra.mxu0 0.0
    %816 = vmatprep.subr.mxu0 0.0
    %817 = vmatpush1.msra.mxu0 0.0
    %818 = vmatprep.subr.mxu0 0.0
    %819 = vmatpush1.msra.mxu0 0.0
    %820 = vmatprep.subr.mxu0 0.0
    %821 = vmatpush1.msra.mxu0 0.0
    %822 = vmatprep.subr.mxu0 0.0
    %823 = vmatpush1.msra.mxu0 0.0
    %824 = vmatprep.subr.mxu0 0.0
    %825 = vmatpush1.msra.mxu0 0.0
    %826 = vmatprep.subr.mxu0 0.0
    %827 = vmatpush1.msra.mxu0 0.0
    %828 = vmatprep.subr.mxu0 0.0
    %829 = vmatpush1.msra.mxu0 0.0
    %830 = vmatprep.subr.mxu0 0.0
    %831 = vmatpush1.msra.mxu0 0.0
    %832 = vmatprep.subr.mxu0 0.0
    %833 = vmatpush1.msra.mxu0 0.0
    %834 = vmatprep.subr.mxu0 0.0
    %835 = vmatpush1.msra.mxu0 0.0
    %836 = vmatprep.subr.mxu0 0.0
    %837 = vmatpush1.msra.mxu0 0.0
    %838 = vmatprep.subr.mxu0 0.0
    %839 = vmatpush1.msra.mxu0 0.0
    %840 = vmatprep.subr.mxu0 0.0
    %841 = vmatpush1.msra.mxu0 0.0
    %842 = vmatprep.subr.mxu0 0.0
    %843 = vmatpush1.msra.mxu0 0.0
    %844 = vmatprep.subr.mxu0 %v741
    %845 = vmatpush1.msra.mxu0 %v738
    %846 = vmatprep.subr.mxu0 0.0
    %847 = vmatpush2.msra.mxu0 0.0
    %848 = vmatprep.subr.mxu0 0.0
    %849 = vmatpush2.msra.mxu0 0.0
    %850 = vmatprep.subr.mxu0 0.0
    %851 = vmatpush2.msra.mxu0 0.0
    %852 = vmatprep.subr.mxu0 0.0
    %853 = vmatpush2.msra.mxu0 0.0
    %854 = vmatprep.subr.mxu0 0.0
    %855 = vmatpush2.msra.mxu0 0.0
    %856 = vmatprep.subr.mxu0 0.0
    %857 = vmatpush2.msra.mxu0 0.0
    %858 = vmatprep.subr.mxu0 0.0
    %859 = vmatpush2.msra.mxu0 0.0
    %860 = vmatprep.subr.mxu0 0.0
    %861 = vmatpush2.msra.mxu0 0.0
    %862 = vmatprep.subr.mxu0 0.0
    %863 = vmatpush2.msra.mxu0 0.0
    %864 = vmatprep.subr.mxu0 0.0
    %865 = vmatpush2.msra.mxu0 0.0
    %866 = vmatprep.subr.mxu0 0.0
    %867 = vmatpush2.msra.mxu0 0.0
    %868 = vmatprep.subr.mxu0 0.0
    %869 = vmatpush2.msra.mxu0 0.0
    %870 = vmatprep.subr.mxu0 0.0
    %871 = vmatpush2.msra.mxu0 0.0
    %872 = vmatprep.subr.mxu0 0.0
    %873 = vmatpush2.msra.mxu0 0.0
    %874 = vmatprep.subr.mxu0 0.0
    %875 = vmatpush2.msra.mxu0 0.0
    %876 = vmatprep.subr.mxu0 0.0
    %877 = vmatpush2.msra.mxu0 0.0
    %878 = vmatprep.mubr.f32.mxu0 0.0
    %879 = vmatmul.mubr.f32.gmra.mxu0 %v729
    %v880 = vpop.f32.mrf.mxu0
    %v881 = vadd.f32 0.0, %v880
    %v882 = vpop.f32.mrf.mxu0
    %v883 = vadd.f32 0.0, %v882
    %884 = vdwg.mxu0
    %v885 = vadd.f32 %v710, %v810
    %v886 = vadd.f32 %v711, %v812
    %v887 = vadd.f32 %v712, %v881
    %v888 = vadd.f32 %v713, %v883
    %889 = vrot.lane.b32.xlu0 %v27, 110
    %v890 = vpop.permute.xlu0 %889
    %891 = vrot.lane.b32.xlu0 %v32, 110
    %v892 = vpop.permute.xlu0 %891
    %893 = vrot.lane.b32.xlu0 %v28, 110
    %v894 = vpop.permute.xlu0 %893
    %895 = vrot.lane.b32.xlu0 %v33, 110
    %v896 = vpop.permute.xlu0 %895
    %vm897 = vcmp.lt.s32.totalorder %v45, 110
    %v898 = vsel %vm897, %v894, %v896
    %v899 = vsel %vm897, %v892, %v894
    %v900 = vsel %vm897, %v890, %v892
    %v901 = vsel %vm897, %v896, %v890
    %902 = vrot.lane.b32.xlu0 %v29, 113
    %v903 = vpop.permute.xlu0 %902
    %v904 = vsel %vm54, %v903, 0
    %v907 = vsel %vm57, %v900, 0
    %v910 = vsel %vm57, %v899, 0
    %v913 = vsel %vm57, %v898, 0
    %v916 = vsel %vm57, %v901, 0
    %918 = vmatprep.subr.mxu0 0.0
    %919 = vmatpush1.msra.mxu0 0.0
    %920 = vmatprep.subr.mxu0 0.0
    %921 = vmatpush1.msra.mxu0 0.0
    %922 = vmatprep.subr.mxu0 0.0
    %923 = vmatpush1.msra.mxu0 0.0
    %924 = vmatprep.subr.mxu0 0.0
    %925 = vmatpush1.msra.mxu0 0.0
    %926 = vmatprep.subr.mxu0 0.0
    %927 = vmatpush1.msra.mxu0 0.0
    %928 = vmatprep.subr.mxu0 0.0
    %929 = vmatpush1.msra.mxu0 0.0
    %930 = vmatprep.subr.mxu0 0.0
    %931 = vmatpush1.msra.mxu0 0.0
    %932 = vmatprep.subr.mxu0 0.0
    %933 = vmatpush1.msra.mxu0 0.0
    %934 = vmatprep.subr.mxu0 0.0
    %935 = vmatpush1.msra.mxu0 0.0
    %936 = vmatprep.subr.mxu0 0.0
    %937 = vmatpush1.msra.mxu0 0.0
    %938 = vmatprep.subr.mxu0 0.0
    %939 = vmatpush1.msra.mxu0 0.0
    %940 = vmatprep.subr.mxu0 0.0
    %941 = vmatpush1.msra.mxu0 0.0
    %942 = vmatprep.subr.mxu0 0.0
    %943 = vmatpush1.msra.mxu0 0.0
    %944 = vmatprep.subr.mxu0 0.0
    %945 = vmatpush1.msra.mxu0 0.0
    %946 = vmatprep.subr.mxu0 0.0
    %947 = vmatpush1.msra.mxu0 0.0
    %948 = vmatprep.subr.mxu0 %v910
    %949 = vmatpush1.msra.mxu0 %v907
    %950 = vmatprep.subr.mxu0 0.0
    %951 = vmatpush2.msra.mxu0 0.0
    %952 = vmatprep.subr.mxu0 0.0
    %953 = vmatpush2.msra.mxu0 0.0
    %954 = vmatprep.subr.mxu0 0.0
    %955 = vmatpush2.msra.mxu0 0.0
    %956 = vmatprep.subr.mxu0 0.0
    %957 = vmatpush2.msra.mxu0 0.0
    %958 = vmatprep.subr.mxu0 0.0
    %959 = vmatpush2.msra.mxu0 0.0
    %960 = vmatprep.subr.mxu0 0.0
    %961 = vmatpush2.msra.mxu0 0.0
    %962 = vmatprep.subr.mxu0 0.0
    %963 = vmatpush2.msra.mxu0 0.0
    %964 = vmatprep.subr.mxu0 0.0
    %965 = vmatpush2.msra.mxu0 0.0
    %966 = vmatprep.subr.mxu0 0.0
    %967 = vmatpush2.msra.mxu0 0.0
    %968 = vmatprep.subr.mxu0 0.0
    %969 = vmatpush2.msra.mxu0 0.0
    %970 = vmatprep.subr.mxu0 0.0
    %971 = vmatpush2.msra.mxu0 0.0
    %972 = vmatprep.subr.mxu0 0.0
    %973 = vmatpush2.msra.mxu0 0.0
    %974 = vmatprep.subr.mxu0 0.0
    %975 = vmatpush2.msra.mxu0 0.0
    %976 = vmatprep.subr.mxu0 0.0
    %977 = vmatpush2.msra.mxu0 0.0
    %978 = vmatprep.subr.mxu0 0.0
    %979 = vmatpush2.msra.mxu0 0.0
    %980 = vmatprep.subr.mxu0 0.0
    %981 = vmatpush2.msra.mxu0 0.0
    %982 = vmatprep.mubr.f32.mxu0 0.0
    %983 = vmatmul.mubr.f32.gmra.mxu0 %v904
    %v984 = vpop.f32.mrf.mxu0
    %v985 = vadd.f32 0.0, %v984
    %v986 = vpop.f32.mrf.mxu0
    %v987 = vadd.f32 0.0, %v986
    %988 = vdwg.mxu0
    %989 = vmatprep.subr.mxu0 0.0
    %990 = vmatpush1.msra.mxu0 0.0
    %991 = vmatprep.subr.mxu0 0.0
    %992 = vmatpush1.msra.mxu0 0.0
    %993 = vmatprep.subr.mxu0 0.0
    %994 = vmatpush1.msra.mxu0 0.0
    %995 = vmatprep.subr.mxu0 0.0
    %996 = vmatpush1.msra.mxu0 0.0
    %997 = vmatprep.subr.mxu0 0.0
    %998 = vmatpush1.msra.mxu0 0.0
    %999 = vmatprep.subr.mxu0 0.0
    %1000 = vmatpush1.msra.mxu0 0.0
    %1001 = vmatprep.subr.mxu0 0.0
    %1002 = vmatpush1.msra.mxu0 0.0
    %1003 = vmatprep.subr.mxu0 0.0
    %1004 = vmatpush1.msra.mxu0 0.0
    %1005 = vmatprep.subr.mxu0 0.0
    %1006 = vmatpush1.msra.mxu0 0.0
    %1007 = vmatprep.subr.mxu0 0.0
    %1008 = vmatpush1.msra.mxu0 0.0
    %1009 = vmatprep.subr.mxu0 0.0
    %1010 = vmatpush1.msra.mxu0 0.0
    %1011 = vmatprep.subr.mxu0 0.0
    %1012 = vmatpush1.msra.mxu0 0.0
    %1013 = vmatprep.subr.mxu0 0.0
    %1014 = vmatpush1.msra.mxu0 0.0
    %1015 = vmatprep.subr.mxu0 0.0
    %1016 = vmatpush1.msra.mxu0 0.0
    %1017 = vmatprep.subr.mxu0 0.0
    %1018 = vmatpush1.msra.mxu0 0.0
    %1019 = vmatprep.subr.mxu0 %v916
    %1020 = vmatpush1.msra.mxu0 %v913
    %1021 = vmatprep.subr.mxu0 0.0
    %1022 = vmatpush2.msra.mxu0 0.0
    %1023 = vmatprep.subr.mxu0 0.0
    %1024 = vmatpush2.msra.mxu0 0.0
    %1025 = vmatprep.subr.mxu0 0.0
    %1026 = vmatpush2.msra.mxu0 0.0
    %1027 = vmatprep.subr.mxu0 0.0
    %1028 = vmatpush2.msra.mxu0 0.0
    %1029 = vmatprep.subr.mxu0 0.0
    %1030 = vmatpush2.msra.mxu0 0.0
    %1031 = vmatprep.subr.mxu0 0.0
    %1032 = vmatpush2.msra.mxu0 0.0
    %1033 = vmatprep.subr.mxu0 0.0
    %1034 = vmatpush2.msra.mxu0 0.0
    %1035 = vmatprep.subr.mxu0 0.0
    %1036 = vmatpush2.msra.mxu0 0.0
    %1037 = vmatprep.subr.mxu0 0.0
    %1038 = vmatpush2.msra.mxu0 0.0
    %1039 = vmatprep.subr.mxu0 0.0
    %1040 = vmatpush2.msra.mxu0 0.0
    %1041 = vmatprep.subr.mxu0 0.0
    %1042 = vmatpush2.msra.mxu0 0.0
    %1043 = vmatprep.subr.mxu0 0.0
    %1044 = vmatpush2.msra.mxu0 0.0
    %1045 = vmatprep.subr.mxu0 0.0
    %1046 = vmatpush2.msra.mxu0 0.0
    %1047 = vmatprep.subr.mxu0 0.0
    %1048 = vmatpush2.msra.mxu0 0.0
    %1049 = vmatprep.subr.mxu0 0.0
    %1050 = vmatpush2.msra.mxu0 0.0
    %1051 = vmatprep.subr.mxu0 0.0
    %1052 = vmatpush2.msra.mxu0 0.0
    %1053 = vmatprep.mubr.f32.mxu0 0.0
    %1054 = vmatmul.mubr.f32.gmra.mxu0 %v904
    %v1055 = vpop.f32.mrf.mxu0
    %v1056 = vadd.f32 0.0, %v1055
    %v1057 = vpop.f32.mrf.mxu0
    %v1058 = vadd.f32 0.0, %v1057
    %1059 = vdwg.mxu0
    %v1060 = vadd.f32 %v885, %v985
    %v1061 = vadd.f32 %v886, %v987
    %v1062 = vadd.f32 %v887, %v1056
    %v1063 = vadd.f32 %v888, %v1058
    %1064 = vrot.lane.b32.xlu0 %v27, 96
    %v1065 = vpop.permute.xlu0 %1064
    %1066 = vrot.lane.b32.xlu0 %v32, 96
    %v1067 = vpop.permute.xlu0 %1066
    %1068 = vrot.lane.b32.xlu0 %v28, 96
    %v1069 = vpop.permute.xlu0 %1068
    %1070 = vrot.lane.b32.xlu0 %v33, 96
    %v1071 = vpop.permute.xlu0 %1070
    %vm1072 = vcmp.lt.s32.totalorder %v45, 96
    %v1073 = vsel %vm1072, %v1069, %v1071
    %v1074 = vsel %vm1072, %v1067, %v1069
    %v1075 = vsel %vm1072, %v1065, %v1067
    %v1076 = vsel %vm1072, %v1071, %v1065
    %1077 = vrot.lane.b32.xlu0 %v29, 110
    %v1078 = vpop.permute.xlu0 %1077
    %v1079 = vsel %vm54, %v1078, 0
    %v1082 = vsel %vm57, %v1075, 0
    %v1085 = vsel %vm57, %v1074, 0
    %v1088 = vsel %vm57, %v1073, 0
    %v1091 = vsel %vm57, %v1076, 0
    %1093 = vmatprep.subr.mxu0 0.0
    %1094 = vmatpush1.msra.mxu0 0.0
    %1095 = vmatprep.subr.mxu0 0.0
    %1096 = vmatpush1.msra.mxu0 0.0
    %1097 = vmatprep.subr.mxu0 0.0
    %1098 = vmatpush1.msra.mxu0 0.0
    %1099 = vmatprep.subr.mxu0 0.0
    %1100 = vmatpush1.msra.mxu0 0.0
    %1101 = vmatprep.subr.mxu0 0.0
    %1102 = vmatpush1.msra.mxu0 0.0
    %1103 = vmatprep.subr.mxu0 0.0
    %1104 = vmatpush1.msra.mxu0 0.0
    %1105 = vmatprep.subr.mxu0 0.0
    %1106 = vmatpush1.msra.mxu0 0.0
    %1107 = vmatprep.subr.mxu0 0.0
    %1108 = vmatpush1.msra.mxu0 0.0
    %1109 = vmatprep.subr.mxu0 0.0
    %1110 = vmatpush1.msra.mxu0 0.0
    %1111 = vmatprep.subr.mxu0 0.0
    %1112 = vmatpush1.msra.mxu0 0.0
    %1113 = vmatprep.subr.mxu0 0.0
    %1114 = vmatpush1.msra.mxu0 0.0
    %1115 = vmatprep.subr.mxu0 0.0
    %1116 = vmatpush1.msra.mxu0 0.0
    %1117 = vmatprep.subr.mxu0 0.0
    %1118 = vmatpush1.msra.mxu0 0.0
    %1119 = vmatprep.subr.mxu0 0.0
    %1120 = vmatpush1.msra.mxu0 0.0
    %1121 = vmatprep.subr.mxu0 0.0
    %1122 = vmatpush1.msra.mxu0 0.0
    %1123 = vmatprep.subr.mxu0 %v1085
    %1124 = vmatpush1.msra.mxu0 %v1082
    %1125 = vmatprep.subr.mxu0 0.0
    %1126 = vmatpush2.msra.mxu0 0.0
    %1127 = vmatprep.subr.mxu0 0.0
    %1128 = vmatpush2.msra.mxu0 0.0
    %1129 = vmatprep.subr.mxu0 0.0
    %1130 = vmatpush2.msra.mxu0 0.0
    %1131 = vmatprep.subr.mxu0 0.0
    %1132 = vmatpush2.msra.mxu0 0.0
    %1133 = vmatprep.subr.mxu0 0.0
    %1134 = vmatpush2.msra.mxu0 0.0
    %1135 = vmatprep.subr.mxu0 0.0
    %1136 = vmatpush2.msra.mxu0 0.0
    %1137 = vmatprep.subr.mxu0 0.0
    %1138 = vmatpush2.msra.mxu0 0.0
    %1139 = vmatprep.subr.mxu0 0.0
    %1140 = vmatpush2.msra.mxu0 0.0
    %1141 = vmatprep.subr.mxu0 0.0
    %1142 = vmatpush2.msra.mxu0 0.0
    %1143 = vmatprep.subr.mxu0 0.0
    %1144 = vmatpush2.msra.mxu0 0.0
    %1145 = vmatprep.subr.mxu0 0.0
    %1146 = vmatpush2.msra.mxu0 0.0
    %1147 = vmatprep.subr.mxu0 0.0
    %1148 = vmatpush2.msra.mxu0 0.0
    %1149 = vmatprep.subr.mxu0 0.0
    %1150 = vmatpush2.msra.mxu0 0.0
    %1151 = vmatprep.subr.mxu0 0.0
    %1152 = vmatpush2.msra.mxu0 0.0
    %1153 = vmatprep.subr.mxu0 0.0
    %1154 = vmatpush2.msra.mxu0 0.0
    %1155 = vmatprep.subr.mxu0 0.0
    %1156 = vmatpush2.msra.mxu0 0.0
    %1157 = vmatprep.mubr.f32.mxu0 0.0
    %1158 = vmatmul.mubr.f32.gmra.mxu0 %v1079
    %v1159 = vpop.f32.mrf.mxu0
    %v1160 = vadd.f32 0.0, %v1159
    %v1161 = vpop.f32.mrf.mxu0
    %v1162 = vadd.f32 0.0, %v1161
    %1163 = vdwg.mxu0
    %1164 = vmatprep.subr.mxu0 0.0
    %1165 = vmatpush1.msra.mxu0 0.0
    %1166 = vmatprep.subr.mxu0 0.0
    %1167 = vmatpush1.msra.mxu0 0.0
    %1168 = vmatprep.subr.mxu0 0.0
    %1169 = vmatpush1.msra.mxu0 0.0
    %1170 = vmatprep.subr.mxu0 0.0
    %1171 = vmatpush1.msra.mxu0 0.0
    %1172 = vmatprep.subr.mxu0 0.0
    %1173 = vmatpush1.msra.mxu0 0.0
    %1174 = vmatprep.subr.mxu0 0.0
    %1175 = vmatpush1.msra.mxu0 0.0
    %1176 = vmatprep.subr.mxu0 0.0
    %1177 = vmatpush1.msra.mxu0 0.0
    %1178 = vmatprep.subr.mxu0 0.0
    %1179 = vmatpush1.msra.mxu0 0.0
    %1180 = vmatprep.subr.mxu0 0.0
    %1181 = vmatpush1.msra.mxu0 0.0
    %1182 = vmatprep.subr.mxu0 0.0
    %1183 = vmatpush1.msra.mxu0 0.0
    %1184 = vmatprep.subr.mxu0 0.0
    %1185 = vmatpush1.msra.mxu0 0.0
    %1186 = vmatprep.subr.mxu0 0.0
    %1187 = vmatpush1.msra.mxu0 0.0
    %1188 = vmatprep.subr.mxu0 0.0
    %1189 = vmatpush1.msra.mxu0 0.0
    %1190 = vmatprep.subr.mxu0 0.0
    %1191 = vmatpush1.msra.mxu0 0.0
    %1192 = vmatprep.subr.mxu0 0.0
    %1193 = vmatpush1.msra.mxu0 0.0
    %1194 = vmatprep.subr.mxu0 %v1091
    %1195 = vmatpush1.msra.mxu0 %v1088
    %1196 = vmatprep.subr.mxu0 0.0
    %1197 = vmatpush2.msra.mxu0 0.0
    %1198 = vmatprep.subr.mxu0 0.0
    %1199 = vmatpush2.msra.mxu0 0.0
    %1200 = vmatprep.subr.mxu0 0.0
    %1201 = vmatpush2.msra.mxu0 0.0
    %1202 = vmatprep.subr.mxu0 0.0
    %1203 = vmatpush2.msra.mxu0 0.0
    %1204 = vmatprep.subr.mxu0 0.0
    %1205 = vmatpush2.msra.mxu0 0.0
    %1206 = vmatprep.subr.mxu0 0.0
    %1207 = vmatpush2.msra.mxu0 0.0
    %1208 = vmatprep.subr.mxu0 0.0
    %1209 = vmatpush2.msra.mxu0 0.0
    %1210 = vmatprep.subr.mxu0 0.0
    %1211 = vmatpush2.msra.mxu0 0.0
    %1212 = vmatprep.subr.mxu0 0.0
    %1213 = vmatpush2.msra.mxu0 0.0
    %1214 = vmatprep.subr.mxu0 0.0
    %1215 = vmatpush2.msra.mxu0 0.0
    %1216 = vmatprep.subr.mxu0 0.0
    %1217 = vmatpush2.msra.mxu0 0.0
    %1218 = vmatprep.subr.mxu0 0.0
    %1219 = vmatpush2.msra.mxu0 0.0
    %1220 = vmatprep.subr.mxu0 0.0
    %1221 = vmatpush2.msra.mxu0 0.0
    %1222 = vmatprep.subr.mxu0 0.0
    %1223 = vmatpush2.msra.mxu0 0.0
    %1224 = vmatprep.subr.mxu0 0.0
    %1225 = vmatpush2.msra.mxu0 0.0
    %1226 = vmatprep.subr.mxu0 0.0
    %1227 = vmatpush2.msra.mxu0 0.0
    %1228 = vmatprep.mubr.f32.mxu0 0.0
    %1229 = vmatmul.mubr.f32.gmra.mxu0 %v1079
    %v1230 = vpop.f32.mrf.mxu0
    %v1231 = vadd.f32 0.0, %v1230
    %v1232 = vpop.f32.mrf.mxu0
    %v1233 = vadd.f32 0.0, %v1232
    %1234 = vdwg.mxu0
    %v1235 = vadd.f32 %v1060, %v1160
    %v1236 = vadd.f32 %v1061, %v1162
    %v1237 = vadd.f32 %v1062, %v1231
    %v1238 = vadd.f32 %v1063, %v1233
    %1239 = vrot.lane.b32.xlu0 %v27, 95
    %v1240 = vpop.permute.xlu0 %1239
    %1241 = vrot.lane.b32.xlu0 %v32, 95
    %v1242 = vpop.permute.xlu0 %1241
    %1243 = vrot.lane.b32.xlu0 %v28, 95
    %v1244 = vpop.permute.xlu0 %1243
    %1245 = vrot.lane.b32.xlu0 %v33, 95
    %v1246 = vpop.permute.xlu0 %1245
    %vm1247 = vcmp.lt.s32.totalorder %v45, 95
    %v1248 = vsel %vm1247, %v1244, %v1246
    %v1249 = vsel %vm1247, %v1242, %v1244
    %v1250 = vsel %vm1247, %v1240, %v1242
    %v1251 = vsel %vm1247, %v1246, %v1240
    %1252 = vrot.lane.b32.xlu0 %v29, 107
    %v1253 = vpop.permute.xlu0 %1252
    %v1254 = vsel %vm54, %v1253, 0
    %v1257 = vsel %vm57, %v1250, 0
    %v1260 = vsel %vm57, %v1249, 0
    %v1263 = vsel %vm57, %v1248, 0
    %v1266 = vsel %vm57, %v1251, 0
    %1268 = vmatprep.subr.mxu0 0.0
    %1269 = vmatpush1.msra.mxu0 0.0
    %1270 = vmatprep.subr.mxu0 0.0
    %1271 = vmatpush1.msra.mxu0 0.0
    %1272 = vmatprep.subr.mxu0 0.0
    %1273 = vmatpush1.msra.mxu0 0.0
    %1274 = vmatprep.subr.mxu0 0.0
    %1275 = vmatpush1.msra.mxu0 0.0
    %1276 = vmatprep.subr.mxu0 0.0
    %1277 = vmatpush1.msra.mxu0 0.0
    %1278 = vmatprep.subr.mxu0 0.0
    %1279 = vmatpush1.msra.mxu0 0.0
    %1280 = vmatprep.subr.mxu0 0.0
    %1281 = vmatpush1.msra.mxu0 0.0
    %1282 = vmatprep.subr.mxu0 0.0
    %1283 = vmatpush1.msra.mxu0 0.0
    %1284 = vmatprep.subr.mxu0 0.0
    %1285 = vmatpush1.msra.mxu0 0.0
    %1286 = vmatprep.subr.mxu0 0.0
    %1287 = vmatpush1.msra.mxu0 0.0
    %1288 = vmatprep.subr.mxu0 0.0
    %1289 = vmatpush1.msra.mxu0 0.0
    %1290 = vmatprep.subr.mxu0 0.0
    %1291 = vmatpush1.msra.mxu0 0.0
    %1292 = vmatprep.subr.mxu0 0.0
    %1293 = vmatpush1.msra.mxu0 0.0
    %1294 = vmatprep.subr.mxu0 0.0
    %1295 = vmatpush1.msra.mxu0 0.0
    %1296 = vmatprep.subr.mxu0 0.0
    %1297 = vmatpush1.msra.mxu0 0.0
    %1298 = vmatprep.subr.mxu0 %v1260
    %1299 = vmatpush1.msra.mxu0 %v1257
    %1300 = vmatprep.subr.mxu0 0.0
    %1301 = vmatpush2.msra.mxu0 0.0
    %1302 = vmatprep.subr.mxu0 0.0
    %1303 = vmatpush2.msra.mxu0 0.0
    %1304 = vmatprep.subr.mxu0 0.0
    %1305 = vmatpush2.msra.mxu0 0.0
    %1306 = vmatprep.subr.mxu0 0.0
    %1307 = vmatpush2.msra.mxu0 0.0
    %1308 = vmatprep.subr.mxu0 0.0
    %1309 = vmatpush2.msra.mxu0 0.0
    %1310 = vmatprep.subr.mxu0 0.0
    %1311 = vmatpush2.msra.mxu0 0.0
    %1312 = vmatprep.subr.mxu0 0.0
    %1313 = vmatpush2.msra.mxu0 0.0
    %1314 = vmatprep.subr.mxu0 0.0
    %1315 = vmatpush2.msra.mxu0 0.0
    %1316 = vmatprep.subr.mxu0 0.0
    %1317 = vmatpush2.msra.mxu0 0.0
    %1318 = vmatprep.subr.mxu0 0.0
    %1319 = vmatpush2.msra.mxu0 0.0
    %1320 = vmatprep.subr.mxu0 0.0
    %1321 = vmatpush2.msra.mxu0 0.0
    %1322 = vmatprep.subr.mxu0 0.0
    %1323 = vmatpush2.msra.mxu0 0.0
    %1324 = vmatprep.subr.mxu0 0.0
    %1325 = vmatpush2.msra.mxu0 0.0
    %1326 = vmatprep.subr.mxu0 0.0
    %1327 = vmatpush2.msra.mxu0 0.0
    %1328 = vmatprep.subr.mxu0 0.0
    %1329 = vmatpush2.msra.mxu0 0.0
    %1330 = vmatprep.subr.mxu0 0.0
    %1331 = vmatpush2.msra.mxu0 0.0
    %1332 = vmatprep.mubr.f32.mxu0 0.0
    %1333 = vmatmul.mubr.f32.gmra.mxu0 %v1254
    %v1334 = vpop.f32.mrf.mxu0
    %v1335 = vadd.f32 0.0, %v1334
    %v1336 = vpop.f32.mrf.mxu0
    %v1337 = vadd.f32 0.0, %v1336
    %1338 = vdwg.mxu0
    %1339 = vmatprep.subr.mxu0 0.0
    %1340 = vmatpush1.msra.mxu0 0.0
    %1341 = vmatprep.subr.mxu0 0.0
    %1342 = vmatpush1.msra.mxu0 0.0
    %1343 = vmatprep.subr.mxu0 0.0
    %1344 = vmatpush1.msra.mxu0 0.0
    %1345 = vmatprep.subr.mxu0 0.0
    %1346 = vmatpush1.msra.mxu0 0.0
    %1347 = vmatprep.subr.mxu0 0.0
    %1348 = vmatpush1.msra.mxu0 0.0
    %1349 = vmatprep.subr.mxu0 0.0
    %1350 = vmatpush1.msra.mxu0 0.0
    %1351 = vmatprep.subr.mxu0 0.0
    %1352 = vmatpush1.msra.mxu0 0.0
    %1353 = vmatprep.subr.mxu0 0.0
    %1354 = vmatpush1.msra.mxu0 0.0
    %1355 = vmatprep.subr.mxu0 0.0
    %1356 = vmatpush1.msra.mxu0 0.0
    %1357 = vmatprep.subr.mxu0 0.0
    %1358 = vmatpush1.msra.mxu0 0.0
    %1359 = vmatprep.subr.mxu0 0.0
    %1360 = vmatpush1.msra.mxu0 0.0
    %1361 = vmatprep.subr.mxu0 0.0
    %1362 = vmatpush1.msra.mxu0 0.0
    %1363 = vmatprep.subr.mxu0 0.0
    %1364 = vmatpush1.msra.mxu0 0.0
    %1365 = vmatprep.subr.mxu0 0.0
    %1366 = vmatpush1.msra.mxu0 0.0
    %1367 = vmatprep.subr.mxu0 0.0
    %1368 = vmatpush1.msra.mxu0 0.0
    %1369 = vmatprep.subr.mxu0 %v1266
    %1370 = vmatpush1.msra.mxu0 %v1263
    %1371 = vmatprep.subr.mxu0 0.0
    %1372 = vmatpush2.msra.mxu0 0.0
    %1373 = vmatprep.subr.mxu0 0.0
    %1374 = vmatpush2.msra.mxu0 0.0
    %1375 = vmatprep.subr.mxu0 0.0
    %1376 = vmatpush2.msra.mxu0 0.0
    %1377 = vmatprep.subr.mxu0 0.0
    %1378 = vmatpush2.msra.mxu0 0.0
    %1379 = vmatprep.subr.mxu0 0.0
    %1380 = vmatpush2.msra.mxu0 0.0
    %1381 = vmatprep.subr.mxu0 0.0
    %1382 = vmatpush2.msra.mxu0 0.0
    %1383 = vmatprep.subr.mxu0 0.0
    %1384 = vmatpush2.msra.mxu0 0.0
    %1385 = vmatprep.subr.mxu0 0.0
    %1386 = vmatpush2.msra.mxu0 0.0
    %1387 = vmatprep.subr.mxu0 0.0
    %1388 = vmatpush2.msra.mxu0 0.0
    %1389 = vmatprep.subr.mxu0 0.0
    %1390 = vmatpush2.msra.mxu0 0.0
    %1391 = vmatprep.subr.mxu0 0.0
    %1392 = vmatpush2.msra.mxu0 0.0
    %1393 = vmatprep.subr.mxu0 0.0
    %1394 = vmatpush2.msra.mxu0 0.0
    %1395 = vmatprep.subr.mxu0 0.0
    %1396 = vmatpush2.msra.mxu0 0.0
    %1397 = vmatprep.subr.mxu0 0.0
    %1398 = vmatpush2.msra.mxu0 0.0
    %1399 = vmatprep.subr.mxu0 0.0
    %1400 = vmatpush2.msra.mxu0 0.0
    %1401 = vmatprep.subr.mxu0 0.0
    %1402 = vmatpush2.msra.mxu0 0.0
    %1403 = vmatprep.mubr.f32.mxu0 0.0
    %1404 = vmatmul.mubr.f32.gmra.mxu0 %v1254
    %v1405 = vpop.f32.mrf.mxu0
    %v1406 = vadd.f32 0.0, %v1405
    %v1407 = vpop.f32.mrf.mxu0
    %v1408 = vadd.f32 0.0, %v1407
    %1409 = vdwg.mxu0
    %v1410 = vadd.f32 %v1235, %v1335
    %v1411 = vadd.f32 %v1236, %v1337
    %v1412 = vadd.f32 %v1237, %v1406
    %v1413 = vadd.f32 %v1238, %v1408
    %1414 = vrot.lane.b32.xlu0 %v27, 94
    %v1415 = vpop.permute.xlu0 %1414
    %1416 = vrot.lane.b32.xlu0 %v32, 94
    %v1417 = vpop.permute.xlu0 %1416
    %1418 = vrot.lane.b32.xlu0 %v28, 94
    %v1419 = vpop.permute.xlu0 %1418
    %1420 = vrot.lane.b32.xlu0 %v33, 94
    %v1421 = vpop.permute.xlu0 %1420
    %vm1422 = vcmp.lt.s32.totalorder %v45, 94
    %v1423 = vsel %vm1422, %v1419, %v1421
    %v1424 = vsel %vm1422, %v1417, %v1419
    %v1425 = vsel %vm1422, %v1415, %v1417
    %v1426 = vsel %vm1422, %v1421, %v1415
    %1427 = vrot.lane.b32.xlu0 %v29, 104
    %v1428 = vpop.permute.xlu0 %1427
    %v1429 = vsel %vm54, %v1428, 0
    %v1432 = vsel %vm57, %v1425, 0
    %v1435 = vsel %vm57, %v1424, 0
    %v1438 = vsel %vm57, %v1423, 0
    %v1441 = vsel %vm57, %v1426, 0
    %1443 = vmatprep.subr.mxu0 0.0
    %1444 = vmatpush1.msra.mxu0 0.0
    %1445 = vmatprep.subr.mxu0 0.0
    %1446 = vmatpush1.msra.mxu0 0.0
    %1447 = vmatprep.subr.mxu0 0.0
    %1448 = vmatpush1.msra.mxu0 0.0
    %1449 = vmatprep.subr.mxu0 0.0
    %1450 = vmatpush1.msra.mxu0 0.0
    %1451 = vmatprep.subr.mxu0 0.0
    %1452 = vmatpush1.msra.mxu0 0.0
    %1453 = vmatprep.subr.mxu0 0.0
    %1454 = vmatpush1.msra.mxu0 0.0
    %1455 = vmatprep.subr.mxu0 0.0
    %1456 = vmatpush1.msra.mxu0 0.0
    %1457 = vmatprep.subr.mxu0 0.0
    %1458 = vmatpush1.msra.mxu0 0.0
    %1459 = vmatprep.subr.mxu0 0.0
    %1460 = vmatpush1.msra.mxu0 0.0
    %1461 = vmatprep.subr.mxu0 0.0
    %1462 = vmatpush1.msra.mxu0 0.0
    %1463 = vmatprep.subr.mxu0 0.0
    %1464 = vmatpush1.msra.mxu0 0.0
    %1465 = vmatprep.subr.mxu0 0.0
    %1466 = vmatpush1.msra.mxu0 0.0
    %1467 = vmatprep.subr.mxu0 0.0
    %1468 = vmatpush1.msra.mxu0 0.0
    %1469 = vmatprep.subr.mxu0 0.0
    %1470 = vmatpush1.msra.mxu0 0.0
    %1471 = vmatprep.subr.mxu0 0.0
    %1472 = vmatpush1.msra.mxu0 0.0
    %1473 = vmatprep.subr.mxu0 %v1435
    %1474 = vmatpush1.msra.mxu0 %v1432
    %1475 = vmatprep.subr.mxu0 0.0
    %1476 = vmatpush2.msra.mxu0 0.0
    %1477 = vmatprep.subr.mxu0 0.0
    %1478 = vmatpush2.msra.mxu0 0.0
    %1479 = vmatprep.subr.mxu0 0.0
    %1480 = vmatpush2.msra.mxu0 0.0
    %1481 = vmatprep.subr.mxu0 0.0
    %1482 = vmatpush2.msra.mxu0 0.0
    %1483 = vmatprep.subr.mxu0 0.0
    %1484 = vmatpush2.msra.mxu0 0.0
    %1485 = vmatprep.subr.mxu0 0.0
    %1486 = vmatpush2.msra.mxu0 0.0
    %1487 = vmatprep.subr.mxu0 0.0
    %1488 = vmatpush2.msra.mxu0 0.0
    %1489 = vmatprep.subr.mxu0 0.0
    %1490 = vmatpush2.msra.mxu0 0.0
    %1491 = vmatprep.subr.mxu0 0.0
    %1492 = vmatpush2.msra.mxu0 0.0
    %1493 = vmatprep.subr.mxu0 0.0
    %1494 = vmatpush2.msra.mxu0 0.0
    %1495 = vmatprep.subr.mxu0 0.0
    %1496 = vmatpush2.msra.mxu0 0.0
    %1497 = vmatprep.subr.mxu0 0.0
    %1498 = vmatpush2.msra.mxu0 0.0
    %1499 = vmatprep.subr.mxu0 0.0
    %1500 = vmatpush2.msra.mxu0 0.0
    %1501 = vmatprep.subr.mxu0 0.0
    %1502 = vmatpush2.msra.mxu0 0.0
    %1503 = vmatprep.subr.mxu0 0.0
    %1504 = vmatpush2.msra.mxu0 0.0
    %1505 = vmatprep.subr.mxu0 0.0
    %1506 = vmatpush2.msra.mxu0 0.0
    %1507 = vmatprep.mubr.f32.mxu0 0.0
    %1508 = vmatmul.mubr.f32.gmra.mxu0 %v1429
    %v1509 = vpop.f32.mrf.mxu0
    %v1510 = vadd.f32 0.0, %v1509
    %v1511 = vpop.f32.mrf.mxu0
    %v1512 = vadd.f32 0.0, %v1511
    %1513 = vdwg.mxu0
    %1514 = vmatprep.subr.mxu0 0.0
    %1515 = vmatpush1.msra.mxu0 0.0
    %1516 = vmatprep.subr.mxu0 0.0
    %1517 = vmatpush1.msra.mxu0 0.0
    %1518 = vmatprep.subr.mxu0 0.0
    %1519 = vmatpush1.msra.mxu0 0.0
    %1520 = vmatprep.subr.mxu0 0.0
    %1521 = vmatpush1.msra.mxu0 0.0
    %1522 = vmatprep.subr.mxu0 0.0
    %1523 = vmatpush1.msra.mxu0 0.0
    %1524 = vmatprep.subr.mxu0 0.0
    %1525 = vmatpush1.msra.mxu0 0.0
    %1526 = vmatprep.subr.mxu0 0.0
    %1527 = vmatpush1.msra.mxu0 0.0
    %1528 = vmatprep.subr.mxu0 0.0
    %1529 = vmatpush1.msra.mxu0 0.0
    %1530 = vmatprep.subr.mxu0 0.0
    %1531 = vmatpush1.msra.mxu0 0.0
    %1532 = vmatprep.subr.mxu0 0.0
    %1533 = vmatpush1.msra.mxu0 0.0
    %1534 = vmatprep.subr.mxu0 0.0
    %1535 = vmatpush1.msra.mxu0 0.0
    %1536 = vmatprep.subr.mxu0 0.0
    %1537 = vmatpush1.msra.mxu0 0.0
    %1538 = vmatprep.subr.mxu0 0.0
    %1539 = vmatpush1.msra.mxu0 0.0
    %1540 = vmatprep.subr.mxu0 0.0
    %1541 = vmatpush1.msra.mxu0 0.0
    %1542 = vmatprep.subr.mxu0 0.0
    %1543 = vmatpush1.msra.mxu0 0.0
    %1544 = vmatprep.subr.mxu0 %v1441
    %1545 = vmatpush1.msra.mxu0 %v1438
    %1546 = vmatprep.subr.mxu0 0.0
    %1547 = vmatpush2.msra.mxu0 0.0
    %1548 = vmatprep.subr.mxu0 0.0
    %1549 = vmatpush2.msra.mxu0 0.0
    %1550 = vmatprep.subr.mxu0 0.0
    %1551 = vmatpush2.msra.mxu0 0.0
    %1552 = vmatprep.subr.mxu0 0.0
    %1553 = vmatpush2.msra.mxu0 0.0
    %1554 = vmatprep.subr.mxu0 0.0
    %1555 = vmatpush2.msra.mxu0 0.0
    %1556 = vmatprep.subr.mxu0 0.0
    %1557 = vmatpush2.msra.mxu0 0.0
    %1558 = vmatprep.subr.mxu0 0.0
    %1559 = vmatpush2.msra.mxu0 0.0
    %1560 = vmatprep.subr.mxu0 0.0
    %1561 = vmatpush2.msra.mxu0 0.0
    %1562 = vmatprep.subr.mxu0 0.0
    %1563 = vmatpush2.msra.mxu0 0.0
    %1564 = vmatprep.subr.mxu0 0.0
    %1565 = vmatpush2.msra.mxu0 0.0
    %1566 = vmatprep.subr.mxu0 0.0
    %1567 = vmatpush2.msra.mxu0 0.0
    %1568 = vmatprep.subr.mxu0 0.0
    %1569 = vmatpush2.msra.mxu0 0.0
    %1570 = vmatprep.subr.mxu0 0.0
    %1571 = vmatpush2.msra.mxu0 0.0
    %1572 = vmatprep.subr.mxu0 0.0
    %1573 = vmatpush2.msra.mxu0 0.0
    %1574 = vmatprep.subr.mxu0 0.0
    %1575 = vmatpush2.msra.mxu0 0.0
    %1576 = vmatprep.subr.mxu0 0.0
    %1577 = vmatpush2.msra.mxu0 0.0
    %1578 = vmatprep.mubr.f32.mxu0 0.0
    %1579 = vmatmul.mubr.f32.gmra.mxu0 %v1429
    %v1580 = vpop.f32.mrf.mxu0
    %v1581 = vadd.f32 0.0, %v1580
    %v1582 = vpop.f32.mrf.mxu0
    %v1583 = vadd.f32 0.0, %v1582
    %1584 = vdwg.mxu0
    %v1585 = vadd.f32 %v1410, %v1510
    %v1586 = vadd.f32 %v1411, %v1512
    %v1587 = vadd.f32 %v1412, %v1581
    %v1588 = vadd.f32 %v1413, %v1583
    %v1589 = vld [vmem:[%s2] sm:$0x3f]
    %1591 = vset.pattern.permute.xlu0 0
    %1592 = vperm.xlu0 %1591, %v1589
    %v1593 = vpop.permute.xlu0 %1592
    %v1595 = vadd.f32 %v1585, %v1593
    %v1596 = vadd.f32 %v1586, %v1593
    %v1597 = vadd.f32 %v1587, %v1593
    %v1598 = vadd.f32 %v1588, %v1593
    %1599 = vst [vmem:[#allocation5] sm:$0x3f] %v1595
    %1600 = vst [vmem:[#allocation5 + $0x8] sm:$0x3f] %v1596
    %1601 = vst [vmem:[#allocation5 + $0x10] sm:$0x3f] %v1597
    %1602 = vst [vmem:[#allocation5 + $0x18] sm:$0x3f] %v1598
    // Predicated region
    $region18: #{tpu_custom_call.1} parent=1 // pred_check
      _
    $region19: #{tpu_custom_call.1} parent=1 // pred_check_branch
      %1604 = sbr.rel (0) target = $region21
    $region20: #{tpu_custom_call.1} parent=1 // pred_region
      %s1606 = ssub.s32 512, 512
      %1607 = vsyncadd [#allocation4], %s1606
      %s1609 = sshll.u32 [#allocation5], 4
      %s1610 = int_to_ptr.vmem [resolvable:$true] %s1609
      %1612 = dma.vmem_to_hbm [thread:$0]  %s1610, 512, %s3, [#allocation4]
    $region21: #{tpu_custom_call.1} parent=1 // pred_fallthru
      _
    // Predicated region
    $region22: #{tpu_custom_call.1} parent=1 // pred_check
      _
    $region23: #{tpu_custom_call.1} parent=1 // pred_check_branch
      %1614 = sbr.rel (0) target = $region25
    $region24: #{tpu_custom_call.1} parent=1 // pred_region
      %1615 = dma.done [#allocation4], 512
    $region25: #{tpu_custom_call.1} parent=1 // pred_fallthru
      _
    %1616 = vsyncpa [#allocation3], 1
    %1617 = vsyncpa [#allocation4], 1

</llo_original>
